<compile_context>
chip_gen: v7x
topology: tpu7x:2x2x1
jax: 0.10.0
libtpu: 0.0.40
codegen_flags: <defaults>
</compile_context>

<pallas_src>
import functools

import jax
import jax.numpy as jnp
from jax import lax
from jax.experimental import pallas as pl
from jax.experimental.pallas import tpu as pltpu


def _round_up(x, m):
    return ((x + m - 1) // m) * m


# -----------------------------------------------------------------------------
# Pass 1: Q/K/V projection (1x1 convs as GEMMs), computed once, stored bf16.
# -----------------------------------------------------------------------------
def pam_proj_kernel(x_ref, wq_ref, bq_ref, wk_ref, bk_ref, wv_ref, bv_ref,
                    q_ref, k_ref, v_ref):
    """Grid = (B, N_pad/tile).  One x tile feeds all three projections."""
    xb = x_ref[0].astype(jnp.bfloat16)                                    # (tn, Cp)
    q_ref[0] = (jnp.dot(xb, wq_ref[...], preferred_element_type=jnp.float32)
                + bq_ref[...]).astype(jnp.bfloat16)                       # (tn, Chp)
    k_ref[0] = (jnp.dot(xb, wk_ref[...], preferred_element_type=jnp.float32)
                + bk_ref[...]).astype(jnp.bfloat16)                       # (tn, Chp)
    v_ref[0] = (jnp.dot(xb, wv_ref[...], preferred_element_type=jnp.float32)
                + bv_ref[...]).astype(jnp.bfloat16)                       # (tn, Cp)


# -----------------------------------------------------------------------------
# Pass 2: flash-style attention over precomputed bf16 Q/K/V + residual.
# -----------------------------------------------------------------------------
def pam_flash_kernel(q_ref, k_ref, v_ref, x_ref, g_ref, out_ref,
                     m_sc, l_sc, acc_sc, *, n_valid, tkv, mask_tail):
    """Grid = (B, N_pad/tq, N_pad/tkv); kv axis innermost ("arbitrary")."""
    ki = pl.program_id(2)
    n_kv = pl.num_programs(2)

    # ---- init online-softmax running state (once per (b, q-tile)).
    @pl.when(ki == 0)
    def _init():
        m_sc[...] = jnp.full_like(m_sc, -jnp.inf)
        l_sc[...] = jnp.zeros_like(l_sc)
        acc_sc[...] = jnp.zeros_like(acc_sc)

    # energy tile: contract the feature dim of q and k (no explicit transpose).
    s = lax.dot_general(q_ref[0], k_ref[0],
                        dimension_numbers=(((1,), (1,)), ((), ())),
                        preferred_element_type=jnp.float32)               # (tq, tkv)

    # Mask padded key columns (only generated when N was actually padded).
    if mask_tail:
        col = ki * tkv + lax.broadcasted_iota(jnp.int32, s.shape, 1)
        s = jnp.where(col < n_valid, s, -jnp.inf)

    # ---- online softmax update (all stats in f32).
    m_prev = m_sc[...]
    m_new = jnp.maximum(m_prev, jnp.max(s, axis=-1, keepdims=True))       # (tq, 1)
    alpha = jnp.exp(m_prev - m_new)                                       # (tq, 1)
    p = jnp.exp(s - m_new)                                                # (tq, tkv)
    l_sc[...] = alpha * l_sc[...] + jnp.sum(p, axis=-1, keepdims=True)
    acc_sc[...] = alpha * acc_sc[...] + jnp.dot(
        p.astype(jnp.bfloat16), v_ref[0], preferred_element_type=jnp.float32)
    m_sc[...] = m_new

    # ---- finalize: single deferred normalization + gamma residual.
    @pl.when(ki == n_kv - 1)
    def _finalize():
        inv_l = pl.reciprocal(l_sc[...], approx=True)                     # (tq, 1)
        gamma = g_ref[0, 0]                                               # SMEM scalar
        out_ref[0] = (gamma * (acc_sc[...] * inv_l)
                      + x_ref[0]).astype(out_ref.dtype)


def _flash_vmem_limit(tq, tkv, chp, cp):
    """Tile-footprint-derived VMEM budget, capped for v7x's 64 MiB/TC."""
    in_bytes = 2 * (tq * chp * 2 + tkv * chp * 2 + tkv * cp * 2 + tq * cp * 4)
    out_bytes = 2 * (tq * cp * 4)
    scratch = tq * cp * 4 + 2 * tq * 4
    need = in_bytes + out_bytes + scratch
    return int(min(max(2 * need, 16 * 1024 * 1024), 40 * 1024 * 1024))


def pam_module_pallas(x_nchw, params):
    """x_nchw: (B, C, H, W) float32.  params: dict of conv weights/biases + gamma."""
    B, C, H, W = x_nchw.shape
    N = H * W
    Ch = C // 2
    Cp = _round_up(C, 128)      # lane-aligned channel count
    Chp = _round_up(Ch, 128)

    # 256-aligned spatial tiles (good fill of the 2x256x256 MXU on v6e/v7x);
    # pad N up to a tile multiple and mask the key tail in-kernel.
    tile = 256 if N > 128 else 128
    n_pad = _round_up(N, tile)
    tq = tkv = tile

    # Glue: NCHW -> (B, N_pad, Cp) channel-last, zero-padded rows/channels.
    x = jnp.transpose(x_nchw.reshape(B, C, N), (0, 2, 1)).astype(jnp.float32)
    x = jnp.pad(x, ((0, 0), (0, n_pad - N), (0, Cp - C)))

    # Weights pre-transposed to (C_in, C_out), zero-padded, bf16 for the MXU.
    wq_t = jnp.pad(params["wq"].reshape(Ch, C).T,
                   ((0, Cp - C), (0, Chp - Ch))).astype(jnp.bfloat16)
    wk_t = jnp.pad(params["wk"].reshape(Ch, C).T,
                   ((0, Cp - C), (0, Chp - Ch))).astype(jnp.bfloat16)
    wv_t = jnp.pad(params["wv"].reshape(C, C).T,
                   ((0, Cp - C), (0, Cp - C))).astype(jnp.bfloat16)
    bq = jnp.pad(params["bq"], (0, Chp - Ch)).reshape(1, Chp).astype(jnp.float32)
    bk = jnp.pad(params["bk"], (0, Chp - Ch)).reshape(1, Chp).astype(jnp.float32)
    bv = jnp.pad(params["bv"], (0, Cp - C)).reshape(1, Cp).astype(jnp.float32)
    gamma = params["gamma"].reshape(1, 1).astype(jnp.float32)

    # ---- Pass 1: projections (each x tile read once, Q/K/V stored bf16).
    q, k, v = pl.pallas_call(
        pam_proj_kernel,
        out_shape=(jax.ShapeDtypeStruct((B, n_pad, Chp), jnp.bfloat16),
                   jax.ShapeDtypeStruct((B, n_pad, Chp), jnp.bfloat16),
                   jax.ShapeDtypeStruct((B, n_pad, Cp), jnp.bfloat16)),
        grid_spec=pltpu.PrefetchScalarGridSpec(
            num_scalar_prefetch=0,
            grid=(B, n_pad // tile),
            in_specs=[
                pl.BlockSpec((1, tile, Cp), lambda b, i: (b, i, 0)),   # x tile
                pl.BlockSpec((Cp, Chp), lambda b, i: (0, 0)),          # Wq^T
                pl.BlockSpec((1, Chp), lambda b, i: (0, 0)),           # bq
                pl.BlockSpec((Cp, Chp), lambda b, i: (0, 0)),          # Wk^T
                pl.BlockSpec((1, Chp), lambda b, i: (0, 0)),           # bk
                pl.BlockSpec((Cp, Cp), lambda b, i: (0, 0)),           # Wv^T
                pl.BlockSpec((1, Cp), lambda b, i: (0, 0)),            # bv
            ],
            out_specs=[
                pl.BlockSpec((1, tile, Chp), lambda b, i: (b, i, 0)),  # Q
                pl.BlockSpec((1, tile, Chp), lambda b, i: (b, i, 0)),  # K
                pl.BlockSpec((1, tile, Cp), lambda b, i: (b, i, 0)),   # V
            ],
        ),
        compiler_params=pltpu.CompilerParams(
            dimension_semantics=("parallel", "parallel")),
    )(x, wq_t, bq, wk_t, bk, wv_t, bv)

    # ---- Pass 2: flash attention + gamma residual.
    flash = functools.partial(pam_flash_kernel, n_valid=N, tkv=tkv,
                              mask_tail=(n_pad != N))
    out = pl.pallas_call(
        flash,
        out_shape=jax.ShapeDtypeStruct((B, n_pad, Cp), jnp.float32),
        grid_spec=pltpu.PrefetchScalarGridSpec(
            num_scalar_prefetch=0,
            grid=(B, n_pad // tq, n_pad // tkv),
            in_specs=[
                pl.BlockSpec((1, tq, Chp), lambda b, qi, ki: (b, qi, 0)),   # Q tile
                pl.BlockSpec((1, tkv, Chp), lambda b, qi, ki: (b, ki, 0)),  # K tile
                pl.BlockSpec((1, tkv, Cp), lambda b, qi, ki: (b, ki, 0)),   # V tile
                pl.BlockSpec((1, tq, Cp), lambda b, qi, ki: (b, qi, 0)),    # x (residual)
                pl.BlockSpec(memory_space=pltpu.MemorySpace.SMEM),          # gamma
            ],
            out_specs=pl.BlockSpec((1, tq, Cp), lambda b, qi, ki: (b, qi, 0)),
            scratch_shapes=[
                pltpu.VMEM((tq, 1), jnp.float32),      # running max m
                pltpu.VMEM((tq, 1), jnp.float32),      # running sum l
                pltpu.VMEM((tq, Cp), jnp.float32),     # output accumulator
            ],
        ),
        compiler_params=pltpu.CompilerParams(
            dimension_semantics=("parallel", "parallel", "arbitrary"),
            vmem_limit_bytes=_flash_vmem_limit(tq, tkv, Chp, Cp),
        ),
    )(q, k, v, x, gamma)

    # Glue: strip spatial/channel padding, (B, N, C) -> NCHW.
    out = out[:, :N, :C]
    return jnp.transpose(out, (0, 2, 1)).reshape(B, C, H, W)


# -----------------------------------------------------------------------------
# Pure-JAX reference (matches the PyTorch forward exactly) + param init.
# -----------------------------------------------------------------------------
def pam_module_reference(x_nchw, params):
    B, C, H, W = x_nchw.shape
    N = H * W
    Ch = C // 2
    xf = x_nchw.reshape(B, C, N).astype(jnp.float32)                       # (B, C, N)
    wq = params["wq"].reshape(Ch, C)
    wk = params["wk"].reshape(Ch, C)
    wv = params["wv"].reshape(C, C)
    q = jnp.einsum("oc,bcn->bon", wq, xf) + params["bq"][None, :, None]    # (B, C//2, N)
    k = jnp.einsum("oc,bcn->bon", wk, xf) + params["bk"][None, :, None]    # (B, C//2, N)
    v = jnp.einsum("oc,bcn->bon", wv, xf) + params["bv"][None, :, None]    # (B, C, N)
    energy = jnp.einsum("bci,bcj->bij", q, k)                              # (B, N, N)
    attention = jax.nn.softmax(energy, axis=-1)
    out = jnp.einsum("bcj,bij->bci", v, attention)                         # (B, C, N)
    out = out.reshape(B, C, H, W)
    return params["gamma"][0] * out + x_nchw


def init_params(key, C, gamma_value=0.0):
    Ch = C // 2
    ks = jax.random.split(key, 6)
    scale = 0.1
    return {
        "wq": scale * jax.random.normal(ks[0], (Ch, C), jnp.float32),   # Conv2d(C, C//2, 1)
        "bq": scale * jax.random.normal(ks[1], (Ch,), jnp.float32),
        "wk": scale * jax.random.normal(ks[2], (Ch, C), jnp.float32),
        "bk": scale * jax.random.normal(ks[3], (Ch,), jnp.float32),
        "wv": scale * jax.random.normal(ks[4], (C, C), jnp.float32),    # Conv2d(C, C, 1)
        "bv": scale * jax.random.normal(ks[5], (C,), jnp.float32),
        "gamma": jnp.full((1,), gamma_value, jnp.float32),              # nn.Parameter(zeros(1))
    }


if __name__ == "__main__":
    key = jax.random.PRNGKey(0)

    # 1) Module-default parameters (gamma = 0): output must equal the input exactly.
    B, C, H, W = 2, 4, 16, 16
    kx, kp = jax.random.split(key)
    x = jax.random.normal(kx, (B, C, H, W), jnp.float32)
    params0 = init_params(kp, C, gamma_value=0.0)
    out0 = jax.block_until_ready(pam_module_pallas(x, params0))
    ref0 = pam_module_reference(x, params0)
    assert out0.shape == (B, C, H, W)
    assert jnp.allclose(out0, ref0, atol=1e-5, rtol=1e-5), float(jnp.max(jnp.abs(out0 - ref0)))

    # 2) Non-zero gamma exercises the attention path (bf16 MXU -> loosened tol).
    params1 = dict(params0, gamma=jnp.full((1,), 0.7, jnp.float32))
    out1 = jax.block_until_ready(pam_module_pallas(x, params1))
    ref1 = pam_module_reference(x, params1)
    assert jnp.allclose(out1, ref1, atol=2e-2, rtol=2e-2), float(jnp.max(jnp.abs(out1 - ref1)))

    # 3) Larger spatial extent exercises the multi-tile online-softmax path
    #    (grid = (B, N/tq, N/tkv) with several q and kv steps).
    B2, C2, H2, W2 = 2, 8, 32, 32
    kx2, kp2 = jax.random.split(jax.random.PRNGKey(1))
    x2 = jax.random.normal(kx2, (B2, C2, H2, W2), jnp.float32)
    params2 = init_params(kp2, C2, gamma_value=0.5)
    out2 = jax.block_until_ready(pam_module_pallas(x2, params2))
    ref2 = pam_module_reference(x2, params2)
    assert jnp.allclose(out2, ref2, atol=2e-2, rtol=2e-2), float(jnp.max(jnp.abs(out2 - ref2)))

    # 4) Non-tile-divisible spatial extent (N = 144) exercises the padded-key
    #    masking path (no more degenerate tile fallback).
    B3, C3, H3, W3 = 2, 4, 12, 12
    kx3, kp3 = jax.random.split(jax.random.PRNGKey(2))
    x3 = jax.random.normal(kx3, (B3, C3, H3, W3), jnp.float32)
    params3 = init_params(kp3, C3, gamma_value=0.3)
    out3 = jax.block_until_ready(pam_module_pallas(x3, params3))
    ref3 = pam_module_reference(x3, params3)
    assert jnp.allclose(out3, ref3, atol=2e-2, rtol=2e-2), float(jnp.max(jnp.abs(out3 - ref3)))

    print("KERNEL_OK")
</pallas_src>

<mosaic_0001>
module attributes {stable_mosaic.version = 11 : i64} {
  func.func @pam_proj_kernel(%arg0: i32, %arg1: i32, %arg2: memref<1x256x128xf32, #tpu.memory_space<vmem>>, %arg3: memref<128x128xbf16, #tpu.memory_space<vmem>>, %arg4: memref<1x128xf32, #tpu.memory_space<vmem>>, %arg5: memref<128x128xbf16, #tpu.memory_space<vmem>>, %arg6: memref<1x128xf32, #tpu.memory_space<vmem>>, %arg7: memref<128x128xbf16, #tpu.memory_space<vmem>>, %arg8: memref<1x128xf32, #tpu.memory_space<vmem>>, %arg9: memref<1x256x128xbf16, #tpu.memory_space<vmem>>, %arg10: memref<1x256x128xbf16, #tpu.memory_space<vmem>>, %arg11: memref<1x256x128xbf16, #tpu.memory_space<vmem>>) attributes {dimension_semantics = [#tpu.dimension_semantics<parallel>, #tpu.dimension_semantics<parallel>], iteration_bounds = array<i64: 2, 1>, scalar_prefetch = 0 : i64, scratch_operands = 0 : i64, tpu.core_type = #tpu.core_type<tc>, window_params = [{transform_indices = @transform_0, window_bounds = array<i64: 1, 256, 128>}, {pipeline_mode = #tpu.pipeline_mode<synchronous>, transform_indices = @transform_1, window_bounds = array<i64: 128, 128>}, {pipeline_mode = #tpu.pipeline_mode<synchronous>, transform_indices = @transform_2, window_bounds = array<i64: 1, 128>}, {pipeline_mode = #tpu.pipeline_mode<synchronous>, transform_indices = @transform_3, window_bounds = array<i64: 128, 128>}, {pipeline_mode = #tpu.pipeline_mode<synchronous>, transform_indices = @transform_4, window_bounds = array<i64: 1, 128>}, {pipeline_mode = #tpu.pipeline_mode<synchronous>, transform_indices = @transform_5, window_bounds = array<i64: 128, 128>}, {pipeline_mode = #tpu.pipeline_mode<synchronous>, transform_indices = @transform_6, window_bounds = array<i64: 1, 128>}, {transform_indices = @transform_7, window_bounds = array<i64: 1, 256, 128>}, {transform_indices = @transform_8, window_bounds = array<i64: 1, 256, 128>}, {transform_indices = @transform_9, window_bounds = array<i64: 1, 256, 128>}]} {
    %c0 = arith.constant 0 : index
    %c0_0 = arith.constant 0 : index
    %c0_1 = arith.constant 0 : index
    %0 = vector.load %arg2[%c0, %c0_0, %c0_1] : memref<1x256x128xf32, #tpu.memory_space<vmem>>, vector<1x256x128xf32>
    %1 = vector.shape_cast %0 : vector<1x256x128xf32> to vector<256x128xf32>
    %2 = arith.truncf %1 : vector<256x128xf32> to vector<256x128xbf16>
    %c0_2 = arith.constant 0 : index
    %c0_3 = arith.constant 0 : index
    %3 = vector.load %arg3[%c0_2, %c0_3] : memref<128x128xbf16, #tpu.memory_space<vmem>>, vector<128x128xbf16>
    %cst = arith.constant dense<0.000000e+00> : vector<256x128xf32>
    %4 = tpu.matmul %2, %3, %cst {dimension_numbers = #tpu.dot_dimension_numbers<[1], [0], [0], [1], [0, 0, 1, 1], [], []>} : vector<256x128xbf16>, vector<128x128xbf16>, vector<256x128xf32> -> vector<256x128xf32>
    %c0_4 = arith.constant 0 : index
    %c0_5 = arith.constant 0 : index
    %5 = vector.load %arg4[%c0_4, %c0_5] : memref<1x128xf32, #tpu.memory_space<vmem>>, vector<1x128xf32>
    %6 = vector.broadcast %5 : vector<1x128xf32> to vector<256x128xf32>
    %7 = arith.addf %4, %6 : vector<256x128xf32>
    %8 = arith.truncf %7 : vector<256x128xf32> to vector<256x128xbf16>
    %c0_6 = arith.constant 0 : index
    %c0_7 = arith.constant 0 : index
    %c0_8 = arith.constant 0 : index
    %9 = vector.load %arg9[%c0_6, %c0_7, %c0_8] : memref<1x256x128xbf16, #tpu.memory_space<vmem>>, vector<1x256x128xbf16>
    %10 = vector.shape_cast %9 : vector<1x256x128xbf16> to vector<256x128xbf16>
    %11 = vector.shape_cast %8 : vector<256x128xbf16> to vector<1x256x128xbf16>
    tpu.vector_store %arg9[%c0_6, %c0_7, %c0_8], %11 {strides = array<i32>} : memref<1x256x128xbf16, #tpu.memory_space<vmem>>, vector<1x256x128xbf16>,
    %c0_9 = arith.constant 0 : index
    %c0_10 = arith.constant 0 : index
    %12 = vector.load %arg5[%c0_9, %c0_10] : memref<128x128xbf16, #tpu.memory_space<vmem>>, vector<128x128xbf16>
    %cst_11 = arith.constant dense<0.000000e+00> : vector<256x128xf32>
    %13 = tpu.matmul %2, %12, %cst_11 {dimension_numbers = #tpu.dot_dimension_numbers<[1], [0], [0], [1], [0, 0, 1, 1], [], []>} : vector<256x128xbf16>, vector<128x128xbf16>, vector<256x128xf32> -> vector<256x128xf32>
    %c0_12 = arith.constant 0 : index
    %c0_13 = arith.constant 0 : index
    %14 = vector.load %arg6[%c0_12, %c0_13] : memref<1x128xf32, #tpu.memory_space<vmem>>, vector<1x128xf32>
    %15 = vector.broadcast %14 : vector<1x128xf32> to vector<256x128xf32>
    %16 = arith.addf %13, %15 : vector<256x128xf32>
    %17 = arith.truncf %16 : vector<256x128xf32> to vector<256x128xbf16>
    %c0_14 = arith.constant 0 : index
    %c0_15 = arith.constant 0 : index
    %c0_16 = arith.constant 0 : index
    %18 = vector.load %arg10[%c0_14, %c0_15, %c0_16] : memref<1x256x128xbf16, #tpu.memory_space<vmem>>, vector<1x256x128xbf16>
    %19 = vector.shape_cast %18 : vector<1x256x128xbf16> to vector<256x128xbf16>
    %20 = vector.shape_cast %17 : vector<256x128xbf16> to vector<1x256x128xbf16>
    tpu.vector_store %arg10[%c0_14, %c0_15, %c0_16], %20 {strides = array<i32>} : memref<1x256x128xbf16, #tpu.memory_space<vmem>>, vector<1x256x128xbf16>,
    %c0_17 = arith.constant 0 : index
    %c0_18 = arith.constant 0 : index
    %21 = vector.load %arg7[%c0_17, %c0_18] : memref<128x128xbf16, #tpu.memory_space<vmem>>, vector<128x128xbf16>
    %cst_19 = arith.constant dense<0.000000e+00> : vector<256x128xf32>
    %22 = tpu.matmul %2, %21, %cst_19 {dimension_numbers = #tpu.dot_dimension_numbers<[1], [0], [0], [1], [0, 0, 1, 1], [], []>} : vector<256x128xbf16>, vector<128x128xbf16>, vector<256x128xf32> -> vector<256x128xf32>
    %c0_20 = arith.constant 0 : index
    %c0_21 = arith.constant 0 : index
    %23 = vector.load %arg8[%c0_20, %c0_21] : memref<1x128xf32, #tpu.memory_space<vmem>>, vector<1x128xf32>
    %24 = vector.broadcast %23 : vector<1x128xf32> to vector<256x128xf32>
    %25 = arith.addf %22, %24 : vector<256x128xf32>
    %26 = arith.truncf %25 : vector<256x128xf32> to vector<256x128xbf16>
    %c0_22 = arith.constant 0 : index
    %c0_23 = arith.constant 0 : index
    %c0_24 = arith.constant 0 : index
    %27 = vector.load %arg11[%c0_22, %c0_23, %c0_24] : memref<1x256x128xbf16, #tpu.memory_space<vmem>>, vector<1x256x128xbf16>
    %28 = vector.shape_cast %27 : vector<1x256x128xbf16> to vector<256x128xbf16>
    %29 = vector.shape_cast %26 : vector<256x128xbf16> to vector<1x256x128xbf16>
    tpu.vector_store %arg11[%c0_22, %c0_23, %c0_24], %29 {strides = array<i32>} : memref<1x256x128xbf16, #tpu.memory_space<vmem>>, vector<1x256x128xbf16>,
    return
  }
  func.func @transform_0(%arg0: i32, %arg1: i32) -> (i32, i32, i32) {
    %c0_i32 = arith.constant 0 : i32
    %c0_i32_0 = arith.constant 0 : i32
    return %arg0, %arg1, %c0_i32 : i32, i32, i32
  }
  func.func @transform_1(%arg0: i32, %arg1: i32) -> (i32, i32) {
    %c0_i32 = arith.constant 0 : i32
    %c0_i32_0 = arith.constant 0 : i32
    %c0_i32_1 = arith.constant 0 : i32
    return %c0_i32, %c0_i32_0 : i32, i32
  }
  func.func @transform_2(%arg0: i32, %arg1: i32) -> (i32, i32) {
    %c0_i32 = arith.constant 0 : i32
    %c0_i32_0 = arith.constant 0 : i32
    %c0_i32_1 = arith.constant 0 : i32
    return %c0_i32, %c0_i32_0 : i32, i32
  }
  func.func @transform_3(%arg0: i32, %arg1: i32) -> (i32, i32) {
    %c0_i32 = arith.constant 0 : i32
    %c0_i32_0 = arith.constant 0 : i32
    %c0_i32_1 = arith.constant 0 : i32
    return %c0_i32, %c0_i32_0 : i32, i32
  }
  func.func @transform_4(%arg0: i32, %arg1: i32) -> (i32, i32) {
    %c0_i32 = arith.constant 0 : i32
    %c0_i32_0 = arith.constant 0 : i32
    %c0_i32_1 = arith.constant 0 : i32
    return %c0_i32, %c0_i32_0 : i32, i32
  }
  func.func @transform_5(%arg0: i32, %arg1: i32) -> (i32, i32) {
    %c0_i32 = arith.constant 0 : i32
    %c0_i32_0 = arith.constant 0 : i32
    %c0_i32_1 = arith.constant 0 : i32
    return %c0_i32, %c0_i32_0 : i32, i32
  }
  func.func @transform_6(%arg0: i32, %arg1: i32) -> (i32, i32) {
    %c0_i32 = arith.constant 0 : i32
    %c0_i32_0 = arith.constant 0 : i32
    %c0_i32_1 = arith.constant 0 : i32
    return %c0_i32, %c0_i32_0 : i32, i32
  }
  func.func @transform_7(%arg0: i32, %arg1: i32) -> (i32, i32, i32) {
    %c0_i32 = arith.constant 0 : i32
    %c0_i32_0 = arith.constant 0 : i32
    return %arg0, %arg1, %c0_i32 : i32, i32, i32
  }
  func.func @transform_8(%arg0: i32, %arg1: i32) -> (i32, i32, i32) {
    %c0_i32 = arith.constant 0 : i32
    %c0_i32_0 = arith.constant 0 : i32
    return %arg0, %arg1, %c0_i32 : i32, i32, i32
  }
  func.func @transform_9(%arg0: i32, %arg1: i32) -> (i32, i32, i32) {
    %c0_i32 = arith.constant 0 : i32
    %c0_i32_0 = arith.constant 0 : i32
    return %arg0, %arg1, %c0_i32 : i32, i32, i32
  }
}

</mosaic_0001>

<llo_original>
// kernel: tpu_custom_call.1
$region0: #{tpu_custom_call.1}
  #allocation0 [shape = 'u32[]', space=smem, size = 0x4, offset = 0x4, fixed_abs, tag = 'smem constant byte address 0x4 - core index']
  #allocation1 [shape = 'u32[144,128]{1,0:T(1,128)}', space=vmem, size = 0x12000, scoped, tag = 'internal scratch']
  %s0 = inlined_call_operand.hbm [shape: f32[2,256,128], index: 0, kind: input, shape index: {}]
  %s1 = inlined_call_operand.hbm [shape: bf16[128,128], index: 1, kind: input, shape index: {}]
  %s2 = inlined_call_operand.vmem [shape: f32[1,128], index: 2, kind: input, shape index: {}]
  %s3 = inlined_call_operand.hbm [shape: bf16[128,128], index: 3, kind: input, shape index: {}]
  %s4 = inlined_call_operand.vmem [shape: f32[1,128], index: 4, kind: input, shape index: {}]
  %s5 = inlined_call_operand.hbm [shape: bf16[128,128], index: 5, kind: input, shape index: {}]
  %s6 = inlined_call_operand.vmem [shape: f32[1,128], index: 6, kind: input, shape index: {}]
  %s7 = inlined_call_operand.hbm [shape: bf16[2,256,128], index: 7, kind: output, shape index: {0}]
  %s8 = inlined_call_operand.hbm [shape: bf16[2,256,128], index: 8, kind: output, shape index: {1}]
  %s9 = inlined_call_operand.hbm [shape: bf16[2,256,128], index: 9, kind: output, shape index: {2}]
  %10 = xla_tuple %s7, %s8, %s9
  %s11 = sld [smem:[#allocation0]]
  $region93: #{tpu_custom_call.1} parent=0
    _
  %s13 = ssub.s32 1, %s11
  %s14 = scalar_select 0, %s13, %s11
  $region1: #{tpu_custom_call.1} parent=0
    #allocation2 [shape = 'u8[262144]{0}', space=vmem, size = 0x40000, scoped, tag = 'input window, operand 0']
    #allocation3 [shape = 's32[2]{0}', space=sflag, size = 0x8, scoped, tag = 'scoped memory for tpu_custom_call.1']
    #allocation4 [shape = 's32[2]{0}', space=sflag, size = 0x8, scoped, tag = 'scoped memory for tpu_custom_call.1']
    #allocation5 [shape = 'u8[32768]{0}', space=vmem, size = 0x8000, scoped, tag = 'input window, operand 1, single buffered']
    #allocation6 [shape = 's32[1]{0}', space=sflag, size = 0x4, scoped, tag = 'scoped memory for tpu_custom_call.1']
    #allocation7 [shape = 'u8[32768]{0}', space=vmem, size = 0x8000, scoped, tag = 'input window, operand 3, single buffered']
    #allocation8 [shape = 'u8[32768]{0}', space=vmem, size = 0x8000, scoped, tag = 'input window, operand 5, single buffered']
    #allocation9 [shape = 's32[1]{0}', space=sflag, size = 0x4, scoped, tag = 'scoped memory for tpu_custom_call.1']
    #allocation10 [shape = 'u8[131072]{0}', space=vmem, size = 0x20000, scoped, tag = 'output window, operand 0']
    #allocation11 [shape = 'u8[131072]{0}', space=vmem, size = 0x20000, scoped, tag = 'output window, operand 1']
    #allocation12 [shape = 's32[2]{0}', space=sflag, size = 0x8, scoped, tag = 'scoped memory for tpu_custom_call.1']
    #allocation13 [shape = 'u8[131072]{0}', space=vmem, size = 0x20000, scoped, tag = 'output window, operand 2']
    %15 = vsyncpa [#allocation3], 0
    %s16 = scalar_lea.sflag [#allocation3], 1
    %17 = vsyncpa %s16, 0
    %18 = vsyncpa [#allocation6], 0
    %19 = vsyncpa [#allocation9], 0
    %20 = vsyncpa [#allocation4], 0
    %s21 = scalar_lea.sflag [#allocation4], 1
    %22 = vsyncpa %s21, 0
    %23 = vsyncpa [#allocation12], 0
    %s24 = scalar_lea.sflag [#allocation12], 1
    %25 = vsyncpa %s24, 0
    loop: start=0, step=1, limit=4
    $region2: #{tpu_custom_call.1} parent=1 // loop_pre_header
      _
    $region3: #{tpu_custom_call.1} parent=1 // loop_header
      %s27 = sphi 0, %s31
      %p28 = scmp.ge.s32.totalorder %s27, 4
      %s34 = sphi 0, %s46
      %s35 = sphi 0, %s42
      %s36 = sphi 0, %s34
      %s37 = sphi 0, %s35
      %s38 = sphi 0, %s36
      %s39 = sphi 0, %s37
      %s51 = sphi 0, %s53
      %s54 = sphi 0, %s51
      %s55 = sphi 0, %s54
      %s71 = sphi 0, %s55
      %s75 = sphi 0, %s75
      %s77 = sphi 0, %s75
      %s78 = sphi 0, %s77
      %s92 = sphi 0, %s78
      %s96 = sphi 0, %s96
      %s98 = sphi 0, %s96
      %s99 = sphi 0, %s98
      %s113 = sphi 0, %s99
      %s117 = sphi 0, %s117
      %s119 = sphi 0, %s117
      %s120 = sphi 0, %s119
      %s134 = sphi 0, %s120
      %s138 = sphi 0, %s138
      %s140 = sphi 0, %s138
      %s141 = sphi 0, %s140
      %s155 = sphi 0, %s141
      %s159 = sphi 0, %s159
      %s161 = sphi 0, %s159
      %s162 = sphi 0, %s161
      %s176 = sphi 0, %s162
      %s180 = sphi 0, %s180
      %s182 = sphi 0, %s180
      %s183 = sphi 0, %s182
      %s197 = sphi 0, %s183
      %s205 = sphi 0, %s207
      %s208 = sphi 0, %s205
      %s209 = sphi 0, %s208
      %s225 = sphi 0, %s209
      %s233 = sphi 0, %s235
      %s236 = sphi 0, %s233
      %s237 = sphi 0, %s236
      %s253 = sphi 0, %s237
      %s261 = sphi 0, %s263
      %s264 = sphi 0, %s261
      %s265 = sphi 0, %s264
      %s281 = sphi 0, %s265
    $region4: #{tpu_custom_call.1} parent=1 // loop_header_branch
      %30 = sbr.rel (%p28) target = $region8
    $region5: #{tpu_custom_call.1} parent=1 // loop_body
      %s32 = ssub.s32 %s27, 1
      %s33 = ssub.s32 %s27, 2
      %s40 = sadd.s32 1, %s35
      %p41 = scmp.ge.s32.totalorder %s40, 1
      %s42 = scalar_select %p41, 0, %s40
      %s43 = sadd.s32 1, %s34
      %s44 = scalar_select %p41, %s43, %s34
      %p45 = scmp.ge.s32.totalorder %s44, 2
      %s46 = scalar_select %p45, 0, %s44
      %s47 = ssub.s32 %s34, %s46
      %s48 = ssub.s32 %s35, %s42
      %s49 = sor.u32 %s47, %s48
      %p50 = scmp.eq.s32.totalorder %s49, 0
      %s52 = sadd.s32 %s51, 1
      %s53 = scalar_select %p50, %s51, %s52
      %p56 = pneg %p50
      %p57 = scmp.eq.s32.totalorder %s27, 1
      %p58 = por %p56, %p57
      %p59 = scmp.ne.s32.totalorder %s51, %s54
      %p60 = scmp.eq.s32.totalorder %s27, 0
      %p61 = por %p59, %p60
      %p62 = scmp.ne.s32.totalorder %s51, %s54
      %p63 = scmp.eq.s32.totalorder %s32, 1
      %p64 = por %p62, %p63
      %p65 = scmp.ne.s32.totalorder %s54, %s55
      %p66 = scmp.eq.s32.totalorder %s32, 0
      %p67 = por %p65, %p66
      %p68 = scmp.ne.s32.totalorder %s54, %s55
      %p69 = scmp.eq.s32.totalorder %s33, 1
      %p70 = por %p68, %p69
      %p72 = scmp.ne.s32.totalorder %s55, %s71
      %p73 = scmp.eq.s32.totalorder %s33, 0
      %p74 = por %p72, %p73
      %s76 = sadd.s32 %s75, 1
      %p79 = scmp.eq.s32.totalorder %s27, 1
      %p80 = scmp.ne.s32.totalorder %s75, %s77
      %p81 = scmp.eq.s32.totalorder %s27, 0
      %p82 = por %p80, %p81
      %p83 = scmp.ne.s32.totalorder %s75, %s77
      %p84 = scmp.eq.s32.totalorder %s32, 1
      %p85 = por %p83, %p84
      %p86 = scmp.ne.s32.totalorder %s77, %s78
      %p87 = scmp.eq.s32.totalorder %s32, 0
      %p88 = por %p86, %p87
      %p89 = scmp.ne.s32.totalorder %s77, %s78
      %p90 = scmp.eq.s32.totalorder %s33, 1
      %p91 = por %p89, %p90
      %p93 = scmp.ne.s32.totalorder %s78, %s92
      %p94 = scmp.eq.s32.totalorder %s33, 0
      %p95 = por %p93, %p94
      %s97 = sadd.s32 %s96, 1
      %p100 = scmp.eq.s32.totalorder %s27, 1
      %p101 = scmp.ne.s32.totalorder %s96, %s98
      %p102 = scmp.eq.s32.totalorder %s27, 0
      %p103 = por %p101, %p102
      %p104 = scmp.ne.s32.totalorder %s96, %s98
      %p105 = scmp.eq.s32.totalorder %s32, 1
      %p106 = por %p104, %p105
      %p107 = scmp.ne.s32.totalorder %s98, %s99
      %p108 = scmp.eq.s32.totalorder %s32, 0
      %p109 = por %p107, %p108
      %p110 = scmp.ne.s32.totalorder %s98, %s99
      %p111 = scmp.eq.s32.totalorder %s33, 1
      %p112 = por %p110, %p111
      %p114 = scmp.ne.s32.totalorder %s99, %s113
      %p115 = scmp.eq.s32.totalorder %s33, 0
      %p116 = por %p114, %p115
      %s118 = sadd.s32 %s117, 1
      %p121 = scmp.eq.s32.totalorder %s27, 1
      %p122 = scmp.ne.s32.totalorder %s117, %s119
      %p123 = scmp.eq.s32.totalorder %s27, 0
      %p124 = por %p122, %p123
      %p125 = scmp.ne.s32.totalorder %s117, %s119
      %p126 = scmp.eq.s32.totalorder %s32, 1
      %p127 = por %p125, %p126
      %p128 = scmp.ne.s32.totalorder %s119, %s120
      %p129 = scmp.eq.s32.totalorder %s32, 0
      %p130 = por %p128, %p129
      %p131 = scmp.ne.s32.totalorder %s119, %s120
      %p132 = scmp.eq.s32.totalorder %s33, 1
      %p133 = por %p131, %p132
      %p135 = scmp.ne.s32.totalorder %s120, %s134
      %p136 = scmp.eq.s32.totalorder %s33, 0
      %p137 = por %p135, %p136
      %s139 = sadd.s32 %s138, 1
      %p142 = scmp.eq.s32.totalorder %s27, 1
      %p143 = scmp.ne.s32.totalorder %s138, %s140
      %p144 = scmp.eq.s32.totalorder %s27, 0
      %p145 = por %p143, %p144
      %p146 = scmp.ne.s32.totalorder %s138, %s140
      %p147 = scmp.eq.s32.totalorder %s32, 1
      %p148 = por %p146, %p147
      %p149 = scmp.ne.s32.totalorder %s140, %s141
      %p150 = scmp.eq.s32.totalorder %s32, 0
      %p151 = por %p149, %p150
      %p152 = scmp.ne.s32.totalorder %s140, %s141
      %p153 = scmp.eq.s32.totalorder %s33, 1
      %p154 = por %p152, %p153
      %p156 = scmp.ne.s32.totalorder %s141, %s155
      %p157 = scmp.eq.s32.totalorder %s33, 0
      %p158 = por %p156, %p157
      %s160 = sadd.s32 %s159, 1
      %p163 = scmp.eq.s32.totalorder %s27, 1
      %p164 = scmp.ne.s32.totalorder %s159, %s161
      %p165 = scmp.eq.s32.totalorder %s27, 0
      %p166 = por %p164, %p165
      %p167 = scmp.ne.s32.totalorder %s159, %s161
      %p168 = scmp.eq.s32.totalorder %s32, 1
      %p169 = por %p167, %p168
      %p170 = scmp.ne.s32.totalorder %s161, %s162
      %p171 = scmp.eq.s32.totalorder %s32, 0
      %p172 = por %p170, %p171
      %p173 = scmp.ne.s32.totalorder %s161, %s162
      %p174 = scmp.eq.s32.totalorder %s33, 1
      %p175 = por %p173, %p174
      %p177 = scmp.ne.s32.totalorder %s162, %s176
      %p178 = scmp.eq.s32.totalorder %s33, 0
      %p179 = por %p177, %p178
      %s181 = sadd.s32 %s180, 1
      %p184 = scmp.eq.s32.totalorder %s27, 1
      %p185 = scmp.ne.s32.totalorder %s180, %s182
      %p186 = scmp.eq.s32.totalorder %s27, 0
      %p187 = por %p185, %p186
      %p188 = scmp.ne.s32.totalorder %s180, %s182
      %p189 = scmp.eq.s32.totalorder %s32, 1
      %p190 = por %p188, %p189
      %p191 = scmp.ne.s32.totalorder %s182, %s183
      %p192 = scmp.eq.s32.totalorder %s32, 0
      %p193 = por %p191, %p192
      %p194 = scmp.ne.s32.totalorder %s182, %s183
      %p195 = scmp.eq.s32.totalorder %s33, 1
      %p196 = por %p194, %p195
      %p198 = scmp.ne.s32.totalorder %s183, %s197
      %p199 = scmp.eq.s32.totalorder %s33, 0
      %p200 = por %p198, %p199
      %s201 = ssub.s32 %s34, %s46
      %s202 = ssub.s32 %s35, %s42
      %s203 = sor.u32 %s201, %s202
      %p204 = scmp.eq.s32.totalorder %s203, 0
      %s206 = sadd.s32 %s205, 1
      %s207 = scalar_select %p204, %s205, %s206
      %p210 = pneg %p204
      %p211 = scmp.eq.s32.totalorder %s27, 1
      %p212 = por %p210, %p211
      %p213 = scmp.ne.s32.totalorder %s205, %s208
      %p214 = scmp.eq.s32.totalorder %s27, 0
      %p215 = por %p213, %p214
      %p216 = scmp.ne.s32.totalorder %s205, %s208
      %p217 = scmp.eq.s32.totalorder %s32, 1
      %p218 = por %p216, %p217
      %p219 = scmp.ne.s32.totalorder %s208, %s209
      %p220 = scmp.eq.s32.totalorder %s32, 0
      %p221 = por %p219, %p220
      %p222 = scmp.ne.s32.totalorder %s208, %s209
      %p223 = scmp.eq.s32.totalorder %s33, 1
      %p224 = por %p222, %p223
      %p226 = scmp.ne.s32.totalorder %s209, %s225
      %p227 = scmp.eq.s32.totalorder %s33, 0
      %p228 = por %p226, %p227
      %s229 = ssub.s32 %s34, %s46
      %s230 = ssub.s32 %s35, %s42
      %s231 = sor.u32 %s229, %s230
      %p232 = scmp.eq.s32.totalorder %s231, 0
      %s234 = sadd.s32 %s233, 1
      %s235 = scalar_select %p232, %s233, %s234
      %p238 = pneg %p232
      %p239 = scmp.eq.s32.totalorder %s27, 1
      %p240 = por %p238, %p239
      %p241 = scmp.ne.s32.totalorder %s233, %s236
      %p242 = scmp.eq.s32.totalorder %s27, 0
      %p243 = por %p241, %p242
      %p244 = scmp.ne.s32.totalorder %s233, %s236
      %p245 = scmp.eq.s32.totalorder %s32, 1
      %p246 = por %p244, %p245
      %p247 = scmp.ne.s32.totalorder %s236, %s237
      %p248 = scmp.eq.s32.totalorder %s32, 0
      %p249 = por %p247, %p248
      %p250 = scmp.ne.s32.totalorder %s236, %s237
      %p251 = scmp.eq.s32.totalorder %s33, 1
      %p252 = por %p250, %p251
      %p254 = scmp.ne.s32.totalorder %s237, %s253
      %p255 = scmp.eq.s32.totalorder %s33, 0
      %p256 = por %p254, %p255
      %s257 = ssub.s32 %s34, %s46
      %s258 = ssub.s32 %s35, %s42
      %s259 = sor.u32 %s257, %s258
      %p260 = scmp.eq.s32.totalorder %s259, 0
      %s262 = sadd.s32 %s261, 1
      %s263 = scalar_select %p260, %s261, %s262
      %p266 = pneg %p260
      %p267 = scmp.eq.s32.totalorder %s27, 1
      %p268 = por %p266, %p267
      %p269 = scmp.ne.s32.totalorder %s261, %s264
      %p270 = scmp.eq.s32.totalorder %s27, 0
      %p271 = por %p269, %p270
      %p272 = scmp.ne.s32.totalorder %s261, %s264
      %p273 = scmp.eq.s32.totalorder %s32, 1
      %p274 = por %p272, %p273
      %p275 = scmp.ne.s32.totalorder %s264, %s265
      %p276 = scmp.eq.s32.totalorder %s32, 0
      %p277 = por %p275, %p276
      %p278 = scmp.ne.s32.totalorder %s264, %s265
      %p279 = scmp.eq.s32.totalorder %s33, 1
      %p280 = por %p278, %p279
      %p282 = scmp.ne.s32.totalorder %s265, %s281
      %p283 = scmp.eq.s32.totalorder %s33, 0
      %p284 = por %p282, %p283
      %p285 = scmp.le.s32.totalorder 1, %s27
      %p286 = scmp.lt.s32.totalorder %s27, 3
      %p287 = pnand %p285, %p286
      %p288 = pneg %p287
      // Predicated region
      $region9: #{tpu_custom_call.1} parent=5 // pred_check
        _
      $region10: #{tpu_custom_call.1} parent=5 // pred_check_branch
        %290 = sbr.rel (%p287) target = $region12
      $region11: #{tpu_custom_call.1} parent=5 // pred_region
        %s291 = ssub.s32 %s27, 1
        // Predicated region
        $region13: #{tpu_custom_call.1} parent=11 // pred_check
          %p292 = pneg %p88
        $region14: #{tpu_custom_call.1} parent=11 // pred_check_branch
          %294 = sbr.rel (%p292) target = $region16
        $region15: #{tpu_custom_call.1} parent=11 // pred_region
          %s296 = ssub.s32 1024, 1024
          %297 = vsyncadd [#allocation6], %s296
          %s298 = sshll.u32 [#allocation5], 4
          %s299 = int_to_ptr.vmem [resolvable:$true] %s298
          %304 = dma.hbm_to_vmem [thread:$0]  %s1, 1024, %s299, [#allocation6], 64, 64, 4
        $region16: #{tpu_custom_call.1} parent=11 // pred_fallthru
          _
        // Predicated region
        $region17: #{tpu_custom_call.1} parent=11 // pred_check
          %p305 = pneg %p109
        $region18: #{tpu_custom_call.1} parent=11 // pred_check_branch
          %307 = sbr.rel (%p305) target = $region20
        $region19: #{tpu_custom_call.1} parent=11 // pred_region
          _
        $region20: #{tpu_custom_call.1} parent=11 // pred_fallthru
          _
        // Predicated region
        $region21: #{tpu_custom_call.1} parent=11 // pred_check
          %p308 = pneg %p130
        $region22: #{tpu_custom_call.1} parent=11 // pred_check_branch
          %310 = sbr.rel (%p308) target = $region24
        $region23: #{tpu_custom_call.1} parent=11 // pred_region
          %s312 = ssub.s32 1024, 1024
          %313 = vsyncadd [#allocation6], %s312
          %s314 = sshll.u32 [#allocation7], 4
          %s315 = int_to_ptr.vmem [resolvable:$true] %s314
          %320 = dma.hbm_to_vmem [thread:$0]  %s3, 1024, %s315, [#allocation6], 64, 64, 4
        $region24: #{tpu_custom_call.1} parent=11 // pred_fallthru
          _
        // Predicated region
        $region25: #{tpu_custom_call.1} parent=11 // pred_check
          %p321 = pneg %p151
        $region26: #{tpu_custom_call.1} parent=11 // pred_check_branch
          %323 = sbr.rel (%p321) target = $region28
        $region27: #{tpu_custom_call.1} parent=11 // pred_region
          _
        $region28: #{tpu_custom_call.1} parent=11 // pred_fallthru
          _
        // Predicated region
        $region29: #{tpu_custom_call.1} parent=11 // pred_check
          %p324 = pneg %p172
        $region30: #{tpu_custom_call.1} parent=11 // pred_check_branch
          %326 = sbr.rel (%p324) target = $region32
        $region31: #{tpu_custom_call.1} parent=11 // pred_region
          %s328 = ssub.s32 1024, 1024
          %329 = vsyncadd [#allocation9], %s328
          %s330 = sshll.u32 [#allocation8], 4
          %s331 = int_to_ptr.vmem [resolvable:$true] %s330
          %336 = dma.hbm_to_vmem [thread:$0]  %s5, 1024, %s331, [#allocation9], 64, 64, 4
        $region32: #{tpu_custom_call.1} parent=11 // pred_fallthru
          _
        // Predicated region
        $region33: #{tpu_custom_call.1} parent=11 // pred_check
          %p337 = pneg %p193
        $region34: #{tpu_custom_call.1} parent=11 // pred_check_branch
          %339 = sbr.rel (%p337) target = $region36
        $region35: #{tpu_custom_call.1} parent=11 // pred_region
          _
        $region36: #{tpu_custom_call.1} parent=11 // pred_fallthru
          _
      $region12: #{tpu_custom_call.1} parent=5 // pred_fallthru
        _
      %p340 = scmp.lt.s32.totalorder %s27, 2
      // Predicated region
      $region37: #{tpu_custom_call.1} parent=5 // pred_check
        %p341 = pneg %p340
      $region38: #{tpu_custom_call.1} parent=5 // pred_check_branch
        %343 = sbr.rel (%p341) target = $region40
      $region39: #{tpu_custom_call.1} parent=5 // pred_region
        // Predicated region
        $region41: #{tpu_custom_call.1} parent=39 // pred_check
          %p344 = pneg %p61
        $region42: #{tpu_custom_call.1} parent=39 // pred_check_branch
          %346 = sbr.rel (%p344) target = $region44
        $region43: #{tpu_custom_call.1} parent=39 // pred_region
          %s347 = sand.u32 %s51, 1
          %s348 = scalar_lea.sflag [#allocation3], %s347
          %s349 = sand.u32 %s51, 1
          %s350 = smul.addr %s349, 256
          %s351 = scalar_lea.vmem [#allocation2], %s350
          %s352 = smul.u32 32, %s35
          %s354 = ssub.s32 4096, 4096
          %355 = vsyncadd %s348, %s354
          %s356 = smul.addr %s34, 32
          %s357 = sadd.s32 %s352, %s356
          %s358 = smul.addr %s357, 128
          %s359 = scalar_lea.hbm %s0, %s358
          %s360 = sshll.u32 %s351, 4
          %s361 = int_to_ptr.vmem [resolvable:$true] %s360
          %366 = dma.hbm_to_vmem [thread:$0]  %s359, 4096, %s361, %s348, 128, 128, 8
        $region44: #{tpu_custom_call.1} parent=39 // pred_fallthru
          _
      $region40: #{tpu_custom_call.1} parent=5 // pred_fallthru
        _
      %p367 = scmp.le.s32.totalorder 1, %s27
      %p368 = scmp.lt.s32.totalorder %s27, 3
      %p369 = pnand %p367, %p368
      %p370 = pneg %p369
      // Predicated region
      $region45: #{tpu_custom_call.1} parent=5 // pred_check
        _
      $region46: #{tpu_custom_call.1} parent=5 // pred_check_branch
        %372 = sbr.rel (%p369) target = $region48
      $region47: #{tpu_custom_call.1} parent=5 // pred_region
        %s373 = ssub.s32 %s27, 1
        %s374 = sand.u32 %s54, 1
        %s375 = scalar_lea.sflag [#allocation3], %s374
        %s376 = sand.u32 %s54, 1
        %s377 = smul.addr %s376, 256
        %s378 = scalar_lea.vmem [#allocation2], %s377
        // Predicated region
        $region49: #{tpu_custom_call.1} parent=47 // pred_check
          %p379 = pneg %p67
        $region50: #{tpu_custom_call.1} parent=47 // pred_check_branch
          %381 = sbr.rel (%p379) target = $region52
        $region51: #{tpu_custom_call.1} parent=47 // pred_region
          %382 = dma.done %s375, 4096
        $region52: #{tpu_custom_call.1} parent=47 // pred_fallthru
          _
        // Predicated region
        $region53: #{tpu_custom_call.1} parent=47 // pred_check
          %p383 = pneg %p88
        $region54: #{tpu_custom_call.1} parent=47 // pred_check_branch
          %385 = sbr.rel (%p383) target = $region56
        $region55: #{tpu_custom_call.1} parent=47 // pred_region
          %386 = dma.done [#allocation6], 1024
        $region56: #{tpu_custom_call.1} parent=47 // pred_fallthru
          _
        // Predicated region
        $region57: #{tpu_custom_call.1} parent=47 // pred_check
          %p387 = pneg %p130
        $region58: #{tpu_custom_call.1} parent=47 // pred_check_branch
          %389 = sbr.rel (%p387) target = $region60
        $region59: #{tpu_custom_call.1} parent=47 // pred_region
          %390 = dma.done [#allocation6], 1024
        $region60: #{tpu_custom_call.1} parent=47 // pred_fallthru
          _
        // Predicated region
        $region61: #{tpu_custom_call.1} parent=47 // pred_check
          %p391 = pneg %p172
        $region62: #{tpu_custom_call.1} parent=47 // pred_check_branch
          %393 = sbr.rel (%p391) target = $region64
        $region63: #{tpu_custom_call.1} parent=47 // pred_region
          %394 = dma.done [#allocation9], 1024
        $region64: #{tpu_custom_call.1} parent=47 // pred_fallthru
          _
        %s395 = sand.u32 %s54, 1
        %s396 = scalar_lea.sflag [#allocation3], %s395
        %s397 = sand.u32 %s54, 1
        %s398 = smul.addr %s397, 256
        %s399 = scalar_lea.vmem [#allocation2], %s398
        %p400 = pneg %p67
        %p401 = pneg %p64
        %p402 = pneg %p88
        %p403 = pneg %p85
        %p404 = pneg %p109
        %p405 = pneg %p106
        %p406 = pneg %p130
        %p407 = pneg %p127
        %p408 = pneg %p151
        %p409 = pneg %p148
        %p410 = pneg %p172
        %p411 = pneg %p169
        %p412 = pneg %p193
        %p413 = pneg %p190
        %p414 = pneg %p221
        %p415 = pneg %p218
        %s416 = sand.u32 %s208, 1
        %s417 = scalar_lea.sflag [#allocation4], %s416
        %s418 = sand.u32 %s208, 1
        %s419 = smul.addr %s418, 128
        %s420 = scalar_lea.vmem [#allocation10], %s419
        %p421 = pneg %p249
        %p422 = pneg %p246
        %s423 = sand.u32 %s32, 1
        %s424 = scalar_lea.sflag [#allocation12], %s423
        %s425 = sand.u32 %s236, 1
        %s426 = smul.addr %s425, 128
        %s427 = scalar_lea.vmem [#allocation11], %s426
        %p428 = pneg %p277
        %p429 = pneg %p274
        %s430 = sand.u32 %s32, 1
        %s431 = scalar_lea.sflag [#allocation12], %s430
        %s432 = sand.u32 %s264, 1
        %s433 = smul.addr %s432, 128
        %s434 = scalar_lea.vmem [#allocation13], %s433
        %s435 = smul.u32 32, %s37
        %s436 = smul.u32 32, %s37
        %s437 = smul.u32 32, %s37
        %s438 = smul.u32 32, %s37
        %v440 = vld [vmem:[%s378] sm:$0xff]
        %v441 = vld [vmem:[%s378 + $0x8] sm:$0xff]
        %v442 = vld [vmem:[%s378 + $0x10] sm:$0xff]
        %v443 = vld [vmem:[%s378 + $0x18] sm:$0xff]
        %v444 = vld [vmem:[%s378 + $0x20] sm:$0xff]
        %v445 = vld [vmem:[%s378 + $0x28] sm:$0xff]
        %v446 = vld [vmem:[%s378 + $0x30] sm:$0xff]
        %v447 = vld [vmem:[%s378 + $0x38] sm:$0xff]
        %v448 = vld [vmem:[%s378 + $0x40] sm:$0xff]
        %v449 = vld [vmem:[%s378 + $0x48] sm:$0xff]
        %v450 = vld [vmem:[%s378 + $0x50] sm:$0xff]
        %v451 = vld [vmem:[%s378 + $0x58] sm:$0xff]
        %v452 = vld [vmem:[%s378 + $0x60] sm:$0xff]
        %v453 = vld [vmem:[%s378 + $0x68] sm:$0xff]
        %v454 = vld [vmem:[%s378 + $0x70] sm:$0xff]
        %v455 = vld [vmem:[%s378 + $0x78] sm:$0xff]
        %v456 = vld [vmem:[%s378 + $0x80] sm:$0xff]
        %v457 = vld [vmem:[%s378 + $0x88] sm:$0xff]
        %v458 = vld [vmem:[%s378 + $0x90] sm:$0xff]
        %v459 = vld [vmem:[%s378 + $0x98] sm:$0xff]
        %v460 = vld [vmem:[%s378 + $0xa0] sm:$0xff]
        %v461 = vld [vmem:[%s378 + $0xa8] sm:$0xff]
        %v462 = vld [vmem:[%s378 + $0xb0] sm:$0xff]
        %v463 = vld [vmem:[%s378 + $0xb8] sm:$0xff]
        %v464 = vld [vmem:[%s378 + $0xc0] sm:$0xff]
        %v465 = vld [vmem:[%s378 + $0xc8] sm:$0xff]
        %v466 = vld [vmem:[%s378 + $0xd0] sm:$0xff]
        %v467 = vld [vmem:[%s378 + $0xd8] sm:$0xff]
        %v468 = vld [vmem:[%s378 + $0xe0] sm:$0xff]
        %v469 = vld [vmem:[%s378 + $0xe8] sm:$0xff]
        %v470 = vld [vmem:[%s378 + $0xf0] sm:$0xff]
        %v471 = vld [vmem:[%s378 + $0xf8] sm:$0xff]
        %v472 = vpack.c.bf16 %v441, %v440
        %v473 = vpack.c.bf16 %v443, %v442
        %v474 = vpack.c.bf16 %v445, %v444
        %v475 = vpack.c.bf16 %v447, %v446
        %v476 = vpack.c.bf16 %v449, %v448
        %v477 = vpack.c.bf16 %v451, %v450
        %v478 = vpack.c.bf16 %v453, %v452
        %v479 = vpack.c.bf16 %v455, %v454
        %v480 = vpack.c.bf16 %v457, %v456
        %v481 = vpack.c.bf16 %v459, %v458
        %v482 = vpack.c.bf16 %v461, %v460
        %v483 = vpack.c.bf16 %v463, %v462
        %v484 = vpack.c.bf16 %v465, %v464
        %v485 = vpack.c.bf16 %v467, %v466
        %v486 = vpack.c.bf16 %v469, %v468
        %v487 = vpack.c.bf16 %v471, %v470
        %v488 = vld [vmem:[#allocation5] sm:$0xf]
        %v489 = vld [vmem:[#allocation5 + $0x4] sm:$0xf]
        %v490 = vld [vmem:[#allocation5 + $0x8] sm:$0xf]
        %v491 = vld [vmem:[#allocation5 + $0xc] sm:$0xf]
        %v492 = vld [vmem:[#allocation5 + $0x10] sm:$0xf]
        %v493 = vld [vmem:[#allocation5 + $0x14] sm:$0xf]
        %v494 = vld [vmem:[#allocation5 + $0x18] sm:$0xf]
        %v495 = vld [vmem:[#allocation5 + $0x1c] sm:$0xf]
        %v496 = vld [vmem:[#allocation5 + $0x20] sm:$0xf]
        %v497 = vld [vmem:[#allocation5 + $0x24] sm:$0xf]
        %v498 = vld [vmem:[#allocation5 + $0x28] sm:$0xf]
        %v499 = vld [vmem:[#allocation5 + $0x2c] sm:$0xf]
        %v500 = vld [vmem:[#allocation5 + $0x30] sm:$0xf]
        %v501 = vld [vmem:[#allocation5 + $0x34] sm:$0xf]
        %v502 = vld [vmem:[#allocation5 + $0x38] sm:$0xf]
        %v503 = vld [vmem:[#allocation5 + $0x3c] sm:$0xf]
        %v504 = vld [vmem:[%s2] sm:$0x1]
        %v506 = vlaneseq
        %v507 = vshrl.u32 %v506, 7
        %v508 = vsub.s32 0, %v507
        %v509 = vrot.slane %v504, %v508
        %v527 = vunpack.c.l.b16 %v488
        %v528 = vunpack.c.l.b16 %v489
        %v529 = vunpack.c.l.b16 %v490
        %v530 = vunpack.c.l.b16 %v491
        %v531 = vunpack.c.l.b16 %v492
        %v532 = vunpack.c.l.b16 %v493
        %v533 = vunpack.c.l.b16 %v494
        %v534 = vunpack.c.l.b16 %v495
        %v535 = vunpack.c.l.b16 %v496
        %v536 = vunpack.c.l.b16 %v497
        %v537 = vunpack.c.l.b16 %v498
        %v538 = vunpack.c.l.b16 %v499
        %v539 = vunpack.c.l.b16 %v500
        %v540 = vunpack.c.l.b16 %v501
        %v541 = vunpack.c.l.b16 %v502
        %v542 = vunpack.c.l.b16 %v503
        %v543 = vpack.c.b16 %v528, %v527
        %v544 = vpack.c.b16 %v530, %v529
        %v545 = vpack.c.b16 %v532, %v531
        %v546 = vpack.c.b16 %v534, %v533
        %v547 = vpack.c.b16 %v536, %v535
        %v548 = vpack.c.b16 %v538, %v537
        %v549 = vpack.c.b16 %v540, %v539
        %v550 = vpack.c.b16 %v542, %v541
        %559 = vmatprep.subr.bf16.mxu0 0
        %560 = vmatpush1.bf16.msra.mxu0 %v543
        %561 = vmatprep.subr.bf16.mxu0 0
        %562 = vmatpush1.bf16.msra.mxu0 %v544
        %563 = vmatprep.subr.bf16.mxu0 0
        %564 = vmatpush1.bf16.msra.mxu0 %v545
        %565 = vmatprep.subr.bf16.mxu0 0
        %566 = vmatpush1.bf16.msra.mxu0 %v546
        %567 = vmatprep.subr.bf16.mxu0 0
        %568 = vmatpush1.bf16.msra.mxu0 %v547
        %569 = vmatprep.subr.bf16.mxu0 0
        %570 = vmatpush1.bf16.msra.mxu0 %v548
        %571 = vmatprep.subr.bf16.mxu0 0
        %572 = vmatpush1.bf16.msra.mxu0 %v549
        %573 = vmatprep.subr.bf16.mxu0 0
        %574 = vmatpush1.bf16.msra.mxu0 %v550
        %575 = vmatprep.subr.bf16.mxu0 0
        %576 = vmatpush1.bf16.msra.mxu0 0
        %577 = vmatprep.subr.bf16.mxu0 0
        %578 = vmatpush1.bf16.msra.mxu0 0
        %579 = vmatprep.subr.bf16.mxu0 0
        %580 = vmatpush1.bf16.msra.mxu0 0
        %581 = vmatprep.subr.bf16.mxu0 0
        %582 = vmatpush1.bf16.msra.mxu0 0
        %583 = vmatprep.subr.bf16.mxu0 0
        %584 = vmatpush1.bf16.msra.mxu0 0
        %585 = vmatprep.subr.bf16.mxu0 0
        %586 = vmatpush1.bf16.msra.mxu0 0
        %587 = vmatprep.subr.bf16.mxu0 0
        %588 = vmatpush1.bf16.msra.mxu0 0
        %589 = vmatprep.subr.bf16.mxu0 0
        %590 = vmatpush1.bf16.msra.mxu0 0
        %591 = vmatprep.mubr.bf16.mxu0 0
        %592 = vmatmul.mubr.bf16.gmra.mrb[0].mxu0 %v472
        %v593 = vpop.f32.mrb[0].mxu0
        %v594 = vadd.f32 %v509, %v593
        %v595 = vpop.f32.mrb[0].mxu0
        %v596 = vpop.f32.mrb[0].mxu0
        %v597 = vadd.f32 %v509, %v596
        %v598 = vpop.f32.mrb[0].mxu0
        %599 = vmatprep.mubr.bf16.mxu0 0
        %600 = vmatmul.mubr.bf16.gmra.mrb[0].mxu0 %v473
        %v601 = vpop.f32.mrb[0].mxu0
        %v602 = vadd.f32 %v509, %v601
        %v603 = vpop.f32.mrb[0].mxu0
        %v604 = vpop.f32.mrb[0].mxu0
        %v605 = vadd.f32 %v509, %v604
        %v606 = vpop.f32.mrb[0].mxu0
        %607 = vmatprep.mubr.bf16.mxu0 0
        %608 = vmatmul.mubr.bf16.gmra.mrb[0].mxu0 %v474
        %v609 = vpop.f32.mrb[0].mxu0
        %v610 = vadd.f32 %v509, %v609
        %v611 = vpop.f32.mrb[0].mxu0
        %v612 = vpop.f32.mrb[0].mxu0
        %v613 = vadd.f32 %v509, %v612
        %v614 = vpop.f32.mrb[0].mxu0
        %615 = vmatprep.mubr.bf16.mxu0 0
        %616 = vmatmul.mubr.bf16.gmra.mrb[0].mxu0 %v475
        %v617 = vpop.f32.mrb[0].mxu0
        %v618 = vadd.f32 %v509, %v617
        %v619 = vpop.f32.mrb[0].mxu0
        %v620 = vpop.f32.mrb[0].mxu0
        %v621 = vadd.f32 %v509, %v620
        %v622 = vpop.f32.mrb[0].mxu0
        %623 = vmatprep.mubr.bf16.mxu0 0
        %624 = vmatmul.mubr.bf16.gmra.mrb[0].mxu0 %v476
        %v625 = vpop.f32.mrb[0].mxu0
        %v626 = vadd.f32 %v509, %v625
        %v627 = vpop.f32.mrb[0].mxu0
        %v628 = vpop.f32.mrb[0].mxu0
        %v629 = vadd.f32 %v509, %v628
        %v630 = vpop.f32.mrb[0].mxu0
        %631 = vmatprep.mubr.bf16.mxu0 0
        %632 = vmatmul.mubr.bf16.gmra.mrb[0].mxu0 %v477
        %v633 = vpop.f32.mrb[0].mxu0
        %v634 = vadd.f32 %v509, %v633
        %v635 = vpop.f32.mrb[0].mxu0
        %v636 = vpop.f32.mrb[0].mxu0
        %v637 = vadd.f32 %v509, %v636
        %v638 = vpop.f32.mrb[0].mxu0
        %639 = vmatprep.mubr.bf16.mxu0 0
        %640 = vmatmul.mubr.bf16.gmra.mrb[0].mxu0 %v478
        %v641 = vpop.f32.mrb[0].mxu0
        %v642 = vadd.f32 %v509, %v641
        %v643 = vpop.f32.mrb[0].mxu0
        %v644 = vpop.f32.mrb[0].mxu0
        %v645 = vadd.f32 %v509, %v644
        %v646 = vpop.f32.mrb[0].mxu0
        %647 = vmatprep.mubr.bf16.mxu0 0
        %648 = vmatmul.mubr.bf16.gmra.mrb[0].mxu0 %v479
        %v649 = vpop.f32.mrb[0].mxu0
        %v650 = vadd.f32 %v509, %v649
        %v651 = vpop.f32.mrb[0].mxu0
        %v652 = vpop.f32.mrb[0].mxu0
        %v653 = vadd.f32 %v509, %v652
        %v654 = vpop.f32.mrb[0].mxu0
        %655 = vmatprep.mubr.bf16.mxu0 0
        %656 = vmatmul.mubr.bf16.gmra.mrb[0].mxu0 %v480
        %v657 = vpop.f32.mrb[0].mxu0
        %v658 = vadd.f32 %v509, %v657
        %v659 = vpop.f32.mrb[0].mxu0
        %v660 = vpop.f32.mrb[0].mxu0
        %v661 = vadd.f32 %v509, %v660
        %v662 = vpop.f32.mrb[0].mxu0
        %663 = vmatprep.mubr.bf16.mxu0 0
        %664 = vmatmul.mubr.bf16.gmra.mrb[0].mxu0 %v481
        %v665 = vpop.f32.mrb[0].mxu0
        %v666 = vadd.f32 %v509, %v665
        %v667 = vpop.f32.mrb[0].mxu0
        %v668 = vpop.f32.mrb[0].mxu0
        %v669 = vadd.f32 %v509, %v668
        %v670 = vpop.f32.mrb[0].mxu0
        %671 = vmatprep.mubr.bf16.mxu0 0
        %672 = vmatmul.mubr.bf16.gmra.mrb[0].mxu0 %v482
        %v673 = vpop.f32.mrb[0].mxu0
        %v674 = vadd.f32 %v509, %v673
        %v675 = vpop.f32.mrb[0].mxu0
        %v676 = vpop.f32.mrb[0].mxu0
        %v677 = vadd.f32 %v509, %v676
        %v678 = vpop.f32.mrb[0].mxu0
        %679 = vmatprep.mubr.bf16.mxu0 0
        %680 = vmatmul.mubr.bf16.gmra.mrb[0].mxu0 %v483
        %v681 = vpop.f32.mrb[0].mxu0
        %v682 = vadd.f32 %v509, %v681
        %v683 = vpop.f32.mrb[0].mxu0
        %v684 = vpop.f32.mrb[0].mxu0
        %v685 = vadd.f32 %v509, %v684
        %v686 = vpop.f32.mrb[0].mxu0
        %687 = vmatprep.mubr.bf16.mxu0 0
        %688 = vmatmul.mubr.bf16.gmra.mrb[0].mxu0 %v484
        %v689 = vpop.f32.mrb[0].mxu0
        %v690 = vadd.f32 %v509, %v689
        %v691 = vpop.f32.mrb[0].mxu0
        %v692 = vpop.f32.mrb[0].mxu0
        %v693 = vadd.f32 %v509, %v692
        %v694 = vpop.f32.mrb[0].mxu0
        %695 = vmatprep.mubr.bf16.mxu0 0
        %696 = vmatmul.mubr.bf16.gmra.mrb[0].mxu0 %v485
        %v697 = vpop.f32.mrb[0].mxu0
        %v698 = vadd.f32 %v509, %v697
        %v699 = vpop.f32.mrb[0].mxu0
        %v700 = vpop.f32.mrb[0].mxu0
        %v701 = vadd.f32 %v509, %v700
        %v702 = vpop.f32.mrb[0].mxu0
        %703 = vmatprep.mubr.bf16.mxu0 0
        %704 = vmatmul.mubr.bf16.gmra.mrb[0].mxu0 %v486
        %v705 = vpop.f32.mrb[0].mxu0
        %v706 = vadd.f32 %v509, %v705
        %v707 = vpop.f32.mrb[0].mxu0
        %v708 = vpop.f32.mrb[0].mxu0
        %v709 = vadd.f32 %v509, %v708
        %v710 = vpop.f32.mrb[0].mxu0
        %711 = vmatprep.mubr.bf16.mxu0 0
        %712 = vmatmul.mubr.bf16.gmra.mrb[0].mxu0 %v487
        %v713 = vpop.f32.mrb[0].mxu0
        %v714 = vadd.f32 %v509, %v713
        %v715 = vpop.f32.mrb[0].mxu0
        %v716 = vpop.f32.mrb[0].mxu0
        %v717 = vadd.f32 %v509, %v716
        %v718 = vpop.f32.mrb[0].mxu0
        %719 = vdwg.mxu0
        %v720 = vpack.c.bf16 %v597, %v594
        %v721 = vpack.c.bf16 %v605, %v602
        %v722 = vpack.c.bf16 %v613, %v610
        %v723 = vpack.c.bf16 %v621, %v618
        %v724 = vpack.c.bf16 %v629, %v626
        %v725 = vpack.c.bf16 %v637, %v634
        %v726 = vpack.c.bf16 %v645, %v642
        %v727 = vpack.c.bf16 %v653, %v650
        %v728 = vpack.c.bf16 %v661, %v658
        %v729 = vpack.c.bf16 %v669, %v666
        %v730 = vpack.c.bf16 %v677, %v674
        %v731 = vpack.c.bf16 %v685, %v682
        %v732 = vpack.c.bf16 %v693, %v690
        %v733 = vpack.c.bf16 %v701, %v698
        %v734 = vpack.c.bf16 %v709, %v706
        %v735 = vpack.c.bf16 %v717, %v714
        %v752 = vunpack.c.l.b16 %v720
        %v753 = vunpack.c.h.b16 %v720
        %v754 = vunpack.c.l.b16 %v721
        %v755 = vunpack.c.h.b16 %v721
        %v756 = vunpack.c.l.b16 %v722
        %v757 = vunpack.c.h.b16 %v722
        %v758 = vunpack.c.l.b16 %v723
        %v759 = vunpack.c.h.b16 %v723
        %v760 = vunpack.c.l.b16 %v724
        %v761 = vunpack.c.h.b16 %v724
        %v762 = vunpack.c.l.b16 %v725
        %v763 = vunpack.c.h.b16 %v725
        %v764 = vunpack.c.l.b16 %v726
        %v765 = vunpack.c.h.b16 %v726
        %v766 = vunpack.c.l.b16 %v727
        %v767 = vunpack.c.h.b16 %v727
        %v768 = vunpack.c.l.b16 %v728
        %v769 = vunpack.c.h.b16 %v728
        %v770 = vunpack.c.l.b16 %v729
        %v771 = vunpack.c.h.b16 %v729
        %v772 = vunpack.c.l.b16 %v730
        %v773 = vunpack.c.h.b16 %v730
        %v774 = vunpack.c.l.b16 %v731
        %v775 = vunpack.c.h.b16 %v731
        %v776 = vunpack.c.l.b16 %v732
        %v777 = vunpack.c.h.b16 %v732
        %v778 = vunpack.c.l.b16 %v733
        %v779 = vunpack.c.h.b16 %v733
        %v780 = vunpack.c.l.b16 %v734
        %v781 = vunpack.c.h.b16 %v734
        %v782 = vunpack.c.l.b16 %v735
        %v783 = vunpack.c.h.b16 %v735
        %v784 = vpack.c.b16 %v752, %v752
        %v785 = vpack.c.b16 %v753, %v753
        %v786 = vpack.c.b16 %v754, %v754
        %v787 = vpack.c.b16 %v755, %v755
        %v788 = vpack.c.b16 %v756, %v756
        %v789 = vpack.c.b16 %v757, %v757
        %v790 = vpack.c.b16 %v758, %v758
        %v791 = vpack.c.b16 %v759, %v759
        %v792 = vpack.c.b16 %v760, %v760
        %v793 = vpack.c.b16 %v761, %v761
        %v794 = vpack.c.b16 %v762, %v762
        %v795 = vpack.c.b16 %v763, %v763
        %v796 = vpack.c.b16 %v764, %v764
        %v797 = vpack.c.b16 %v765, %v765
        %v798 = vpack.c.b16 %v766, %v766
        %v799 = vpack.c.b16 %v767, %v767
        %v800 = vpack.c.b16 %v768, %v768
        %v801 = vpack.c.b16 %v769, %v769
        %v802 = vpack.c.b16 %v770, %v770
        %v803 = vpack.c.b16 %v771, %v771
        %v804 = vpack.c.b16 %v772, %v772
        %v805 = vpack.c.b16 %v773, %v773
        %v806 = vpack.c.b16 %v774, %v774
        %v807 = vpack.c.b16 %v775, %v775
        %v808 = vpack.c.b16 %v776, %v776
        %v809 = vpack.c.b16 %v777, %v777
        %v810 = vpack.c.b16 %v778, %v778
        %v811 = vpack.c.b16 %v779, %v779
        %v812 = vpack.c.b16 %v780, %v780
        %v813 = vpack.c.b16 %v781, %v781
        %v814 = vpack.c.b16 %v782, %v782
        %v815 = vpack.c.b16 %v783, %v783
        %848 = vst [vmem:[%s420] sm:$0xf] %v784
        %849 = vst [vmem:[%s420 + $0x4] sm:$0xf] %v785
        %850 = vst [vmem:[%s420 + $0x8] sm:$0xf] %v786
        %851 = vst [vmem:[%s420 + $0xc] sm:$0xf] %v787
        %852 = vst [vmem:[%s420 + $0x10] sm:$0xf] %v788
        %853 = vst [vmem:[%s420 + $0x14] sm:$0xf] %v789
        %854 = vst [vmem:[%s420 + $0x18] sm:$0xf] %v790
        %855 = vst [vmem:[%s420 + $0x1c] sm:$0xf] %v791
        %856 = vst [vmem:[%s420 + $0x20] sm:$0xf] %v792
        %857 = vst [vmem:[%s420 + $0x24] sm:$0xf] %v793
        %858 = vst [vmem:[%s420 + $0x28] sm:$0xf] %v794
        %859 = vst [vmem:[%s420 + $0x2c] sm:$0xf] %v795
        %860 = vst [vmem:[%s420 + $0x30] sm:$0xf] %v796
        %861 = vst [vmem:[%s420 + $0x34] sm:$0xf] %v797
        %862 = vst [vmem:[%s420 + $0x38] sm:$0xf] %v798
        %863 = vst [vmem:[%s420 + $0x3c] sm:$0xf] %v799
        %864 = vst [vmem:[%s420 + $0x40] sm:$0xf] %v800
        %865 = vst [vmem:[%s420 + $0x44] sm:$0xf] %v801
        %866 = vst [vmem:[%s420 + $0x48] sm:$0xf] %v802
        %867 = vst [vmem:[%s420 + $0x4c] sm:$0xf] %v803
        %868 = vst [vmem:[%s420 + $0x50] sm:$0xf] %v804
        %869 = vst [vmem:[%s420 + $0x54] sm:$0xf] %v805
        %870 = vst [vmem:[%s420 + $0x58] sm:$0xf] %v806
        %871 = vst [vmem:[%s420 + $0x5c] sm:$0xf] %v807
        %872 = vst [vmem:[%s420 + $0x60] sm:$0xf] %v808
        %873 = vst [vmem:[%s420 + $0x64] sm:$0xf] %v809
        %874 = vst [vmem:[%s420 + $0x68] sm:$0xf] %v810
        %875 = vst [vmem:[%s420 + $0x6c] sm:$0xf] %v811
        %876 = vst [vmem:[%s420 + $0x70] sm:$0xf] %v812
        %877 = vst [vmem:[%s420 + $0x74] sm:$0xf] %v813
        %878 = vst [vmem:[%s420 + $0x78] sm:$0xf] %v814
        %879 = vst [vmem:[%s420 + $0x7c] sm:$0xf] %v815
        %v880 = vld [vmem:[#allocation7] sm:$0xf]
        %v881 = vld [vmem:[#allocation7 + $0x4] sm:$0xf]
        %v882 = vld [vmem:[#allocation7 + $0x8] sm:$0xf]
        %v883 = vld [vmem:[#allocation7 + $0xc] sm:$0xf]
        %v884 = vld [vmem:[#allocation7 + $0x10] sm:$0xf]
        %v885 = vld [vmem:[#allocation7 + $0x14] sm:$0xf]
        %v886 = vld [vmem:[#allocation7 + $0x18] sm:$0xf]
        %v887 = vld [vmem:[#allocation7 + $0x1c] sm:$0xf]
        %v888 = vld [vmem:[#allocation7 + $0x20] sm:$0xf]
        %v889 = vld [vmem:[#allocation7 + $0x24] sm:$0xf]
        %v890 = vld [vmem:[#allocation7 + $0x28] sm:$0xf]
        %v891 = vld [vmem:[#allocation7 + $0x2c] sm:$0xf]
        %v892 = vld [vmem:[#allocation7 + $0x30] sm:$0xf]
        %v893 = vld [vmem:[#allocation7 + $0x34] sm:$0xf]
        %v894 = vld [vmem:[#allocation7 + $0x38] sm:$0xf]
        %v895 = vld [vmem:[#allocation7 + $0x3c] sm:$0xf]
        %v896 = vld [vmem:[%s4] sm:$0x1]
        %v898 = vlaneseq
        %v899 = vshrl.u32 %v898, 7
        %v900 = vsub.s32 0, %v899
        %v901 = vrot.slane %v896, %v900
        %v919 = vunpack.c.l.b16 %v880
        %v920 = vunpack.c.l.b16 %v881
        %v921 = vunpack.c.l.b16 %v882
        %v922 = vunpack.c.l.b16 %v883
        %v923 = vunpack.c.l.b16 %v884
        %v924 = vunpack.c.l.b16 %v885
        %v925 = vunpack.c.l.b16 %v886
        %v926 = vunpack.c.l.b16 %v887
        %v927 = vunpack.c.l.b16 %v888
        %v928 = vunpack.c.l.b16 %v889
        %v929 = vunpack.c.l.b16 %v890
        %v930 = vunpack.c.l.b16 %v891
        %v931 = vunpack.c.l.b16 %v892
        %v932 = vunpack.c.l.b16 %v893
        %v933 = vunpack.c.l.b16 %v894
        %v934 = vunpack.c.l.b16 %v895
        %v935 = vpack.c.b16 %v920, %v919
        %v936 = vpack.c.b16 %v922, %v921
        %v937 = vpack.c.b16 %v924, %v923
        %v938 = vpack.c.b16 %v926, %v925
        %v939 = vpack.c.b16 %v928, %v927
        %v940 = vpack.c.b16 %v930, %v929
        %v941 = vpack.c.b16 %v932, %v931
        %v942 = vpack.c.b16 %v934, %v933
        %951 = vmatprep.subr.bf16.mxu0 0
        %952 = vmatpush1.bf16.msra.mxu0 %v935
        %953 = vmatprep.subr.bf16.mxu0 0
        %954 = vmatpush1.bf16.msra.mxu0 %v936
        %955 = vmatprep.subr.bf16.mxu0 0
        %956 = vmatpush1.bf16.msra.mxu0 %v937
        %957 = vmatprep.subr.bf16.mxu0 0
        %958 = vmatpush1.bf16.msra.mxu0 %v938
        %959 = vmatprep.subr.bf16.mxu0 0
        %960 = vmatpush1.bf16.msra.mxu0 %v939
        %961 = vmatprep.subr.bf16.mxu0 0
        %962 = vmatpush1.bf16.msra.mxu0 %v940
        %963 = vmatprep.subr.bf16.mxu0 0
        %964 = vmatpush1.bf16.msra.mxu0 %v941
        %965 = vmatprep.subr.bf16.mxu0 0
        %966 = vmatpush1.bf16.msra.mxu0 %v942
        %967 = vmatprep.subr.bf16.mxu0 0
        %968 = vmatpush1.bf16.msra.mxu0 0
        %969 = vmatprep.subr.bf16.mxu0 0
        %970 = vmatpush1.bf16.msra.mxu0 0
        %971 = vmatprep.subr.bf16.mxu0 0
        %972 = vmatpush1.bf16.msra.mxu0 0
        %973 = vmatprep.subr.bf16.mxu0 0
        %974 = vmatpush1.bf16.msra.mxu0 0
        %975 = vmatprep.subr.bf16.mxu0 0
        %976 = vmatpush1.bf16.msra.mxu0 0
        %977 = vmatprep.subr.bf16.mxu0 0
        %978 = vmatpush1.bf16.msra.mxu0 0
        %979 = vmatprep.subr.bf16.mxu0 0
        %980 = vmatpush1.bf16.msra.mxu0 0
        %981 = vmatprep.subr.bf16.mxu0 0
        %982 = vmatpush1.bf16.msra.mxu0 0
        %983 = vmatprep.mubr.bf16.mxu0 0
        %984 = vmatmul.mubr.bf16.gmra.mrb[0].mxu0 %v472
        %v985 = vpop.f32.mrb[0].mxu0
        %v986 = vadd.f32 %v901, %v985
        %v987 = vpop.f32.mrb[0].mxu0
        %v988 = vpop.f32.mrb[0].mxu0
        %v989 = vadd.f32 %v901, %v988
        %v990 = vpop.f32.mrb[0].mxu0
        %991 = vmatprep.mubr.bf16.mxu0 0
        %992 = vmatmul.mubr.bf16.gmra.mrb[0].mxu0 %v473
        %v993 = vpop.f32.mrb[0].mxu0
        %v994 = vadd.f32 %v901, %v993
        %v995 = vpop.f32.mrb[0].mxu0
        %v996 = vpop.f32.mrb[0].mxu0
        %v997 = vadd.f32 %v901, %v996
        %v998 = vpop.f32.mrb[0].mxu0
        %999 = vmatprep.mubr.bf16.mxu0 0
        %1000 = vmatmul.mubr.bf16.gmra.mrb[0].mxu0 %v474
        %v1001 = vpop.f32.mrb[0].mxu0
        %v1002 = vadd.f32 %v901, %v1001
        %v1003 = vpop.f32.mrb[0].mxu0
        %v1004 = vpop.f32.mrb[0].mxu0
        %v1005 = vadd.f32 %v901, %v1004
        %v1006 = vpop.f32.mrb[0].mxu0
        %1007 = vmatprep.mubr.bf16.mxu0 0
        %1008 = vmatmul.mubr.bf16.gmra.mrb[0].mxu0 %v475
        %v1009 = vpop.f32.mrb[0].mxu0
        %v1010 = vadd.f32 %v901, %v1009
        %v1011 = vpop.f32.mrb[0].mxu0
        %v1012 = vpop.f32.mrb[0].mxu0
        %v1013 = vadd.f32 %v901, %v1012
        %v1014 = vpop.f32.mrb[0].mxu0
        %1015 = vmatprep.mubr.bf16.mxu0 0
        %1016 = vmatmul.mubr.bf16.gmra.mrb[0].mxu0 %v476
        %v1017 = vpop.f32.mrb[0].mxu0
        %v1018 = vadd.f32 %v901, %v1017
        %v1019 = vpop.f32.mrb[0].mxu0
        %v1020 = vpop.f32.mrb[0].mxu0
        %v1021 = vadd.f32 %v901, %v1020
        %v1022 = vpop.f32.mrb[0].mxu0
        %1023 = vmatprep.mubr.bf16.mxu0 0
        %1024 = vmatmul.mubr.bf16.gmra.mrb[0].mxu0 %v477
        %v1025 = vpop.f32.mrb[0].mxu0
        %v1026 = vadd.f32 %v901, %v1025
        %v1027 = vpop.f32.mrb[0].mxu0
        %v1028 = vpop.f32.mrb[0].mxu0
        %v1029 = vadd.f32 %v901, %v1028
        %v1030 = vpop.f32.mrb[0].mxu0
        %1031 = vmatprep.mubr.bf16.mxu0 0
        %1032 = vmatmul.mubr.bf16.gmra.mrb[0].mxu0 %v478
        %v1033 = vpop.f32.mrb[0].mxu0
        %v1034 = vadd.f32 %v901, %v1033
        %v1035 = vpop.f32.mrb[0].mxu0
        %v1036 = vpop.f32.mrb[0].mxu0
        %v1037 = vadd.f32 %v901, %v1036
        %v1038 = vpop.f32.mrb[0].mxu0
        %1039 = vmatprep.mubr.bf16.mxu0 0
        %1040 = vmatmul.mubr.bf16.gmra.mrb[0].mxu0 %v479
        %v1041 = vpop.f32.mrb[0].mxu0
        %v1042 = vadd.f32 %v901, %v1041
        %v1043 = vpop.f32.mrb[0].mxu0
        %v1044 = vpop.f32.mrb[0].mxu0
        %v1045 = vadd.f32 %v901, %v1044
        %v1046 = vpop.f32.mrb[0].mxu0
        %1047 = vmatprep.mubr.bf16.mxu0 0
        %1048 = vmatmul.mubr.bf16.gmra.mrb[0].mxu0 %v480
        %v1049 = vpop.f32.mrb[0].mxu0
        %v1050 = vadd.f32 %v901, %v1049
        %v1051 = vpop.f32.mrb[0].mxu0
        %v1052 = vpop.f32.mrb[0].mxu0
        %v1053 = vadd.f32 %v901, %v1052
        %v1054 = vpop.f32.mrb[0].mxu0
        %1055 = vmatprep.mubr.bf16.mxu0 0
        %1056 = vmatmul.mubr.bf16.gmra.mrb[0].mxu0 %v481
        %v1057 = vpop.f32.mrb[0].mxu0
        %v1058 = vadd.f32 %v901, %v1057
        %v1059 = vpop.f32.mrb[0].mxu0
        %v1060 = vpop.f32.mrb[0].mxu0
        %v1061 = vadd.f32 %v901, %v1060
        %v1062 = vpop.f32.mrb[0].mxu0
        %1063 = vmatprep.mubr.bf16.mxu0 0
        %1064 = vmatmul.mubr.bf16.gmra.mrb[0].mxu0 %v482
        %v1065 = vpop.f32.mrb[0].mxu0
        %v1066 = vadd.f32 %v901, %v1065
        %v1067 = vpop.f32.mrb[0].mxu0
        %v1068 = vpop.f32.mrb[0].mxu0
        %v1069 = vadd.f32 %v901, %v1068
        %v1070 = vpop.f32.mrb[0].mxu0
        %1071 = vmatprep.mubr.bf16.mxu0 0
        %1072 = vmatmul.mubr.bf16.gmra.mrb[0].mxu0 %v483
        %v1073 = vpop.f32.mrb[0].mxu0
        %v1074 = vadd.f32 %v901, %v1073
        %v1075 = vpop.f32.mrb[0].mxu0
        %v1076 = vpop.f32.mrb[0].mxu0
        %v1077 = vadd.f32 %v901, %v1076
        %v1078 = vpop.f32.mrb[0].mxu0
        %1079 = vmatprep.mubr.bf16.mxu0 0
        %1080 = vmatmul.mubr.bf16.gmra.mrb[0].mxu0 %v484
        %v1081 = vpop.f32.mrb[0].mxu0
        %v1082 = vadd.f32 %v901, %v1081
        %v1083 = vpop.f32.mrb[0].mxu0
        %v1084 = vpop.f32.mrb[0].mxu0
        %v1085 = vadd.f32 %v901, %v1084
        %v1086 = vpop.f32.mrb[0].mxu0
        %1087 = vmatprep.mubr.bf16.mxu0 0
        %1088 = vmatmul.mubr.bf16.gmra.mrb[0].mxu0 %v485
        %v1089 = vpop.f32.mrb[0].mxu0
        %v1090 = vadd.f32 %v901, %v1089
        %v1091 = vpop.f32.mrb[0].mxu0
        %v1092 = vpop.f32.mrb[0].mxu0
        %v1093 = vadd.f32 %v901, %v1092
        %v1094 = vpop.f32.mrb[0].mxu0
        %1095 = vmatprep.mubr.bf16.mxu0 0
        %1096 = vmatmul.mubr.bf16.gmra.mrb[0].mxu0 %v486
        %v1097 = vpop.f32.mrb[0].mxu0
        %v1098 = vadd.f32 %v901, %v1097
        %v1099 = vpop.f32.mrb[0].mxu0
        %v1100 = vpop.f32.mrb[0].mxu0
        %v1101 = vadd.f32 %v901, %v1100
        %v1102 = vpop.f32.mrb[0].mxu0
        %1103 = vmatprep.mubr.bf16.mxu0 0
        %1104 = vmatmul.mubr.bf16.gmra.mrb[0].mxu0 %v487
        %v1105 = vpop.f32.mrb[0].mxu0
        %v1106 = vadd.f32 %v901, %v1105
        %v1107 = vpop.f32.mrb[0].mxu0
        %v1108 = vpop.f32.mrb[0].mxu0
        %v1109 = vadd.f32 %v901, %v1108
        %v1110 = vpop.f32.mrb[0].mxu0
        %1111 = vdwg.mxu0
        %v1112 = vpack.c.bf16 %v989, %v986
        %v1113 = vpack.c.bf16 %v997, %v994
        %v1114 = vpack.c.bf16 %v1005, %v1002
        %v1115 = vpack.c.bf16 %v1013, %v1010
        %v1116 = vpack.c.bf16 %v1021, %v1018
        %v1117 = vpack.c.bf16 %v1029, %v1026
        %v1118 = vpack.c.bf16 %v1037, %v1034
        %v1119 = vpack.c.bf16 %v1045, %v1042
        %v1120 = vpack.c.bf16 %v1053, %v1050
        %v1121 = vpack.c.bf16 %v1061, %v1058
        %v1122 = vpack.c.bf16 %v1069, %v1066
        %v1123 = vpack.c.bf16 %v1077, %v1074
        %v1124 = vpack.c.bf16 %v1085, %v1082
        %v1125 = vpack.c.bf16 %v1093, %v1090
        %v1126 = vpack.c.bf16 %v1101, %v1098
        %v1127 = vpack.c.bf16 %v1109, %v1106
        %v1144 = vunpack.c.l.b16 %v1112
        %v1145 = vunpack.c.h.b16 %v1112
        %v1146 = vunpack.c.l.b16 %v1113
        %v1147 = vunpack.c.h.b16 %v1113
        %v1148 = vunpack.c.l.b16 %v1114
        %v1149 = vunpack.c.h.b16 %v1114
        %v1150 = vunpack.c.l.b16 %v1115
        %v1151 = vunpack.c.h.b16 %v1115
        %v1152 = vunpack.c.l.b16 %v1116
        %v1153 = vunpack.c.h.b16 %v1116
        %v1154 = vunpack.c.l.b16 %v1117
        %v1155 = vunpack.c.h.b16 %v1117
        %v1156 = vunpack.c.l.b16 %v1118
        %v1157 = vunpack.c.h.b16 %v1118
        %v1158 = vunpack.c.l.b16 %v1119
        %v1159 = vunpack.c.h.b16 %v1119
        %v1160 = vunpack.c.l.b16 %v1120
        %v1161 = vunpack.c.h.b16 %v1120
        %v1162 = vunpack.c.l.b16 %v1121
        %v1163 = vunpack.c.h.b16 %v1121
        %v1164 = vunpack.c.l.b16 %v1122
        %v1165 = vunpack.c.h.b16 %v1122
        %v1166 = vunpack.c.l.b16 %v1123
        %v1167 = vunpack.c.h.b16 %v1123
        %v1168 = vunpack.c.l.b16 %v1124
        %v1169 = vunpack.c.h.b16 %v1124
        %v1170 = vunpack.c.l.b16 %v1125
        %v1171 = vunpack.c.h.b16 %v1125
        %v1172 = vunpack.c.l.b16 %v1126
        %v1173 = vunpack.c.h.b16 %v1126
        %v1174 = vunpack.c.l.b16 %v1127
        %v1175 = vunpack.c.h.b16 %v1127
        %v1176 = vpack.c.b16 %v1144, %v1144
        %v1177 = vpack.c.b16 %v1145, %v1145
        %v1178 = vpack.c.b16 %v1146, %v1146
        %v1179 = vpack.c.b16 %v1147, %v1147
        %v1180 = vpack.c.b16 %v1148, %v1148
        %v1181 = vpack.c.b16 %v1149, %v1149
        %v1182 = vpack.c.b16 %v1150, %v1150
        %v1183 = vpack.c.b16 %v1151, %v1151
        %v1184 = vpack.c.b16 %v1152, %v1152
        %v1185 = vpack.c.b16 %v1153, %v1153
        %v1186 = vpack.c.b16 %v1154, %v1154
        %v1187 = vpack.c.b16 %v1155, %v1155
        %v1188 = vpack.c.b16 %v1156, %v1156
        %v1189 = vpack.c.b16 %v1157, %v1157
        %v1190 = vpack.c.b16 %v1158, %v1158
        %v1191 = vpack.c.b16 %v1159, %v1159
        %v1192 = vpack.c.b16 %v1160, %v1160
        %v1193 = vpack.c.b16 %v1161, %v1161
        %v1194 = vpack.c.b16 %v1162, %v1162
        %v1195 = vpack.c.b16 %v1163, %v1163
        %v1196 = vpack.c.b16 %v1164, %v1164
        %v1197 = vpack.c.b16 %v1165, %v1165
        %v1198 = vpack.c.b16 %v1166, %v1166
        %v1199 = vpack.c.b16 %v1167, %v1167
        %v1200 = vpack.c.b16 %v1168, %v1168
        %v1201 = vpack.c.b16 %v1169, %v1169
        %v1202 = vpack.c.b16 %v1170, %v1170
        %v1203 = vpack.c.b16 %v1171, %v1171
        %v1204 = vpack.c.b16 %v1172, %v1172
        %v1205 = vpack.c.b16 %v1173, %v1173
        %v1206 = vpack.c.b16 %v1174, %v1174
        %v1207 = vpack.c.b16 %v1175, %v1175
        %1240 = vst [vmem:[%s427] sm:$0xf] %v1176
        %1241 = vst [vmem:[%s427 + $0x4] sm:$0xf] %v1177
        %1242 = vst [vmem:[%s427 + $0x8] sm:$0xf] %v1178
        %1243 = vst [vmem:[%s427 + $0xc] sm:$0xf] %v1179
        %1244 = vst [vmem:[%s427 + $0x10] sm:$0xf] %v1180
        %1245 = vst [vmem:[%s427 + $0x14] sm:$0xf] %v1181
        %1246 = vst [vmem:[%s427 + $0x18] sm:$0xf] %v1182
        %1247 = vst [vmem:[%s427 + $0x1c] sm:$0xf] %v1183
        %1248 = vst [vmem:[%s427 + $0x20] sm:$0xf] %v1184
        %1249 = vst [vmem:[%s427 + $0x24] sm:$0xf] %v1185
        %1250 = vst [vmem:[%s427 + $0x28] sm:$0xf] %v1186
        %1251 = vst [vmem:[%s427 + $0x2c] sm:$0xf] %v1187
        %1252 = vst [vmem:[%s427 + $0x30] sm:$0xf] %v1188
        %1253 = vst [vmem:[%s427 + $0x34] sm:$0xf] %v1189
        %1254 = vst [vmem:[%s427 + $0x38] sm:$0xf] %v1190
        %1255 = vst [vmem:[%s427 + $0x3c] sm:$0xf] %v1191
        %1256 = vst [vmem:[%s427 + $0x40] sm:$0xf] %v1192
        %1257 = vst [vmem:[%s427 + $0x44] sm:$0xf] %v1193
        %1258 = vst [vmem:[%s427 + $0x48] sm:$0xf] %v1194
        %1259 = vst [vmem:[%s427 + $0x4c] sm:$0xf] %v1195
        %1260 = vst [vmem:[%s427 + $0x50] sm:$0xf] %v1196
        %1261 = vst [vmem:[%s427 + $0x54] sm:$0xf] %v1197
        %1262 = vst [vmem:[%s427 + $0x58] sm:$0xf] %v1198
        %1263 = vst [vmem:[%s427 + $0x5c] sm:$0xf] %v1199
        %1264 = vst [vmem:[%s427 + $0x60] sm:$0xf] %v1200
        %1265 = vst [vmem:[%s427 + $0x64] sm:$0xf] %v1201
        %1266 = vst [vmem:[%s427 + $0x68] sm:$0xf] %v1202
        %1267 = vst [vmem:[%s427 + $0x6c] sm:$0xf] %v1203
        %1268 = vst [vmem:[%s427 + $0x70] sm:$0xf] %v1204
        %1269 = vst [vmem:[%s427 + $0x74] sm:$0xf] %v1205
        %1270 = vst [vmem:[%s427 + $0x78] sm:$0xf] %v1206
        %1271 = vst [vmem:[%s427 + $0x7c] sm:$0xf] %v1207
        %v1272 = vld [vmem:[#allocation8] sm:$0xf]
        %v1273 = vld [vmem:[#allocation8 + $0x4] sm:$0xf]
        %v1274 = vld [vmem:[#allocation8 + $0x8] sm:$0xf]
        %v1275 = vld [vmem:[#allocation8 + $0xc] sm:$0xf]
        %v1276 = vld [vmem:[#allocation8 + $0x10] sm:$0xf]
        %v1277 = vld [vmem:[#allocation8 + $0x14] sm:$0xf]
        %v1278 = vld [vmem:[#allocation8 + $0x18] sm:$0xf]
        %v1279 = vld [vmem:[#allocation8 + $0x1c] sm:$0xf]
        %v1280 = vld [vmem:[#allocation8 + $0x20] sm:$0xf]
        %v1281 = vld [vmem:[#allocation8 + $0x24] sm:$0xf]
        %v1282 = vld [vmem:[#allocation8 + $0x28] sm:$0xf]
        %v1283 = vld [vmem:[#allocation8 + $0x2c] sm:$0xf]
        %v1284 = vld [vmem:[#allocation8 + $0x30] sm:$0xf]
        %v1285 = vld [vmem:[#allocation8 + $0x34] sm:$0xf]
        %v1286 = vld [vmem:[#allocation8 + $0x38] sm:$0xf]
        %v1287 = vld [vmem:[#allocation8 + $0x3c] sm:$0xf]
        %v1288 = vld [vmem:[%s6] sm:$0x1]
        %v1290 = vlaneseq
        %v1291 = vshrl.u32 %v1290, 7
        %v1292 = vsub.s32 0, %v1291
        %v1293 = vrot.slane %v1288, %v1292
        %v1311 = vunpack.c.l.b16 %v1272
        %v1312 = vunpack.c.l.b16 %v1273
        %v1313 = vunpack.c.l.b16 %v1274
        %v1314 = vunpack.c.l.b16 %v1275
        %v1315 = vunpack.c.l.b16 %v1276
        %v1316 = vunpack.c.l.b16 %v1277
        %v1317 = vunpack.c.l.b16 %v1278
        %v1318 = vunpack.c.l.b16 %v1279
        %v1319 = vunpack.c.l.b16 %v1280
        %v1320 = vunpack.c.l.b16 %v1281
        %v1321 = vunpack.c.l.b16 %v1282
        %v1322 = vunpack.c.l.b16 %v1283
        %v1323 = vunpack.c.l.b16 %v1284
        %v1324 = vunpack.c.l.b16 %v1285
        %v1325 = vunpack.c.l.b16 %v1286
        %v1326 = vunpack.c.l.b16 %v1287
        %v1327 = vpack.c.b16 %v1312, %v1311
        %v1328 = vpack.c.b16 %v1314, %v1313
        %v1329 = vpack.c.b16 %v1316, %v1315
        %v1330 = vpack.c.b16 %v1318, %v1317
        %v1331 = vpack.c.b16 %v1320, %v1319
        %v1332 = vpack.c.b16 %v1322, %v1321
        %v1333 = vpack.c.b16 %v1324, %v1323
        %v1334 = vpack.c.b16 %v1326, %v1325
        %1343 = vmatprep.subr.bf16.mxu0 0
        %1344 = vmatpush1.bf16.msra.mxu0 %v1327
        %1345 = vmatprep.subr.bf16.mxu0 0
        %1346 = vmatpush1.bf16.msra.mxu0 %v1328
        %1347 = vmatprep.subr.bf16.mxu0 0
        %1348 = vmatpush1.bf16.msra.mxu0 %v1329
        %1349 = vmatprep.subr.bf16.mxu0 0
        %1350 = vmatpush1.bf16.msra.mxu0 %v1330
        %1351 = vmatprep.subr.bf16.mxu0 0
        %1352 = vmatpush1.bf16.msra.mxu0 %v1331
        %1353 = vmatprep.subr.bf16.mxu0 0
        %1354 = vmatpush1.bf16.msra.mxu0 %v1332
        %1355 = vmatprep.subr.bf16.mxu0 0
        %1356 = vmatpush1.bf16.msra.mxu0 %v1333
        %1357 = vmatprep.subr.bf16.mxu0 0
        %1358 = vmatpush1.bf16.msra.mxu0 %v1334
        %1359 = vmatprep.subr.bf16.mxu0 0
        %1360 = vmatpush1.bf16.msra.mxu0 0
        %1361 = vmatprep.subr.bf16.mxu0 0
        %1362 = vmatpush1.bf16.msra.mxu0 0
        %1363 = vmatprep.subr.bf16.mxu0 0
        %1364 = vmatpush1.bf16.msra.mxu0 0
        %1365 = vmatprep.subr.bf16.mxu0 0
        %1366 = vmatpush1.bf16.msra.mxu0 0
        %1367 = vmatprep.subr.bf16.mxu0 0
        %1368 = vmatpush1.bf16.msra.mxu0 0
        %1369 = vmatprep.subr.bf16.mxu0 0
        %1370 = vmatpush1.bf16.msra.mxu0 0
        %1371 = vmatprep.subr.bf16.mxu0 0
        %1372 = vmatpush1.bf16.msra.mxu0 0
        %1373 = vmatprep.subr.bf16.mxu0 0
        %1374 = vmatpush1.bf16.msra.mxu0 0
        %1375 = vmatprep.mubr.bf16.mxu0 0
        %1376 = vmatmul.mubr.bf16.gmra.mrb[0].mxu0 %v472
        %v1377 = vpop.f32.mrb[0].mxu0
        %v1378 = vadd.f32 %v1293, %v1377
        %v1379 = vpop.f32.mrb[0].mxu0
        %v1380 = vpop.f32.mrb[0].mxu0
        %v1381 = vadd.f32 %v1293, %v1380
        %v1382 = vpop.f32.mrb[0].mxu0
        %1383 = vmatprep.mubr.bf16.mxu0 0
        %1384 = vmatmul.mubr.bf16.gmra.mrb[0].mxu0 %v473
        %v1385 = vpop.f32.mrb[0].mxu0
        %v1386 = vadd.f32 %v1293, %v1385
        %v1387 = vpop.f32.mrb[0].mxu0
        %v1388 = vpop.f32.mrb[0].mxu0
        %v1389 = vadd.f32 %v1293, %v1388
        %v1390 = vpop.f32.mrb[0].mxu0
        %1391 = vmatprep.mubr.bf16.mxu0 0
        %1392 = vmatmul.mubr.bf16.gmra.mrb[0].mxu0 %v474
        %v1393 = vpop.f32.mrb[0].mxu0
        %v1394 = vadd.f32 %v1293, %v1393
        %v1395 = vpop.f32.mrb[0].mxu0
        %v1396 = vpop.f32.mrb[0].mxu0
        %v1397 = vadd.f32 %v1293, %v1396
        %v1398 = vpop.f32.mrb[0].mxu0
        %1399 = vmatprep.mubr.bf16.mxu0 0
        %1400 = vmatmul.mubr.bf16.gmra.mrb[0].mxu0 %v475
        %v1401 = vpop.f32.mrb[0].mxu0
        %v1402 = vadd.f32 %v1293, %v1401
        %v1403 = vpop.f32.mrb[0].mxu0
        %v1404 = vpop.f32.mrb[0].mxu0
        %v1405 = vadd.f32 %v1293, %v1404
        %v1406 = vpop.f32.mrb[0].mxu0
        %1407 = vmatprep.mubr.bf16.mxu0 0
        %1408 = vmatmul.mubr.bf16.gmra.mrb[0].mxu0 %v476
        %v1409 = vpop.f32.mrb[0].mxu0
        %v1410 = vadd.f32 %v1293, %v1409
        %v1411 = vpop.f32.mrb[0].mxu0
        %v1412 = vpop.f32.mrb[0].mxu0
        %v1413 = vadd.f32 %v1293, %v1412
        %v1414 = vpop.f32.mrb[0].mxu0
        %1415 = vmatprep.mubr.bf16.mxu0 0
        %1416 = vmatmul.mubr.bf16.gmra.mrb[0].mxu0 %v477
        %v1417 = vpop.f32.mrb[0].mxu0
        %v1418 = vadd.f32 %v1293, %v1417
        %v1419 = vpop.f32.mrb[0].mxu0
        %v1420 = vpop.f32.mrb[0].mxu0
        %v1421 = vadd.f32 %v1293, %v1420
        %v1422 = vpop.f32.mrb[0].mxu0
        %1423 = vmatprep.mubr.bf16.mxu0 0
        %1424 = vmatmul.mubr.bf16.gmra.mrb[0].mxu0 %v478
        %v1425 = vpop.f32.mrb[0].mxu0
        %v1426 = vadd.f32 %v1293, %v1425
        %v1427 = vpop.f32.mrb[0].mxu0
        %v1428 = vpop.f32.mrb[0].mxu0
        %v1429 = vadd.f32 %v1293, %v1428
        %v1430 = vpop.f32.mrb[0].mxu0
        %1431 = vmatprep.mubr.bf16.mxu0 0
        %1432 = vmatmul.mubr.bf16.gmra.mrb[0].mxu0 %v479
        %v1433 = vpop.f32.mrb[0].mxu0
        %v1434 = vadd.f32 %v1293, %v1433
        %v1435 = vpop.f32.mrb[0].mxu0
        %v1436 = vpop.f32.mrb[0].mxu0
        %v1437 = vadd.f32 %v1293, %v1436
        %v1438 = vpop.f32.mrb[0].mxu0
        %1439 = vmatprep.mubr.bf16.mxu0 0
        %1440 = vmatmul.mubr.bf16.gmra.mrb[0].mxu0 %v480
        %v1441 = vpop.f32.mrb[0].mxu0
        %v1442 = vadd.f32 %v1293, %v1441
        %v1443 = vpop.f32.mrb[0].mxu0
        %v1444 = vpop.f32.mrb[0].mxu0
        %v1445 = vadd.f32 %v1293, %v1444
        %v1446 = vpop.f32.mrb[0].mxu0
        %1447 = vmatprep.mubr.bf16.mxu0 0
        %1448 = vmatmul.mubr.bf16.gmra.mrb[0].mxu0 %v481
        %v1449 = vpop.f32.mrb[0].mxu0
        %v1450 = vadd.f32 %v1293, %v1449
        %v1451 = vpop.f32.mrb[0].mxu0
        %v1452 = vpop.f32.mrb[0].mxu0
        %v1453 = vadd.f32 %v1293, %v1452
        %v1454 = vpop.f32.mrb[0].mxu0
        %1455 = vmatprep.mubr.bf16.mxu0 0
        %1456 = vmatmul.mubr.bf16.gmra.mrb[0].mxu0 %v482
        %v1457 = vpop.f32.mrb[0].mxu0
        %v1458 = vadd.f32 %v1293, %v1457
        %v1459 = vpop.f32.mrb[0].mxu0
        %v1460 = vpop.f32.mrb[0].mxu0
        %v1461 = vadd.f32 %v1293, %v1460
        %v1462 = vpop.f32.mrb[0].mxu0
        %1463 = vmatprep.mubr.bf16.mxu0 0
        %1464 = vmatmul.mubr.bf16.gmra.mrb[0].mxu0 %v483
        %v1465 = vpop.f32.mrb[0].mxu0
        %v1466 = vadd.f32 %v1293, %v1465
        %v1467 = vpop.f32.mrb[0].mxu0
        %v1468 = vpop.f32.mrb[0].mxu0
        %v1469 = vadd.f32 %v1293, %v1468
        %v1470 = vpop.f32.mrb[0].mxu0
        %1471 = vmatprep.mubr.bf16.mxu0 0
        %1472 = vmatmul.mubr.bf16.gmra.mrb[0].mxu0 %v484
        %v1473 = vpop.f32.mrb[0].mxu0
        %v1474 = vadd.f32 %v1293, %v1473
        %v1475 = vpop.f32.mrb[0].mxu0
        %v1476 = vpop.f32.mrb[0].mxu0
        %v1477 = vadd.f32 %v1293, %v1476
        %v1478 = vpop.f32.mrb[0].mxu0
        %1479 = vmatprep.mubr.bf16.mxu0 0
        %1480 = vmatmul.mubr.bf16.gmra.mrb[0].mxu0 %v485
        %v1481 = vpop.f32.mrb[0].mxu0
        %v1482 = vadd.f32 %v1293, %v1481
        %v1483 = vpop.f32.mrb[0].mxu0
        %v1484 = vpop.f32.mrb[0].mxu0
        %v1485 = vadd.f32 %v1293, %v1484
        %v1486 = vpop.f32.mrb[0].mxu0
        %1487 = vmatprep.mubr.bf16.mxu0 0
        %1488 = vmatmul.mubr.bf16.gmra.mrb[0].mxu0 %v486
        %v1489 = vpop.f32.mrb[0].mxu0
        %v1490 = vadd.f32 %v1293, %v1489
        %v1491 = vpop.f32.mrb[0].mxu0
        %v1492 = vpop.f32.mrb[0].mxu0
        %v1493 = vadd.f32 %v1293, %v1492
        %v1494 = vpop.f32.mrb[0].mxu0
        %1495 = vmatprep.mubr.bf16.mxu0 0
        %1496 = vmatmul.mubr.bf16.gmra.mrb[0].mxu0 %v487
        %v1497 = vpop.f32.mrb[0].mxu0
        %v1498 = vadd.f32 %v1293, %v1497
        %v1499 = vpop.f32.mrb[0].mxu0
        %v1500 = vpop.f32.mrb[0].mxu0
        %v1501 = vadd.f32 %v1293, %v1500
        %v1502 = vpop.f32.mrb[0].mxu0
        %1503 = vdwg.mxu0
        %v1504 = vpack.c.bf16 %v1381, %v1378
        %v1505 = vpack.c.bf16 %v1389, %v1386
        %v1506 = vpack.c.bf16 %v1397, %v1394
        %v1507 = vpack.c.bf16 %v1405, %v1402
        %v1508 = vpack.c.bf16 %v1413, %v1410
        %v1509 = vpack.c.bf16 %v1421, %v1418
        %v1510 = vpack.c.bf16 %v1429, %v1426
        %v1511 = vpack.c.bf16 %v1437, %v1434
        %v1512 = vpack.c.bf16 %v1445, %v1442
        %v1513 = vpack.c.bf16 %v1453, %v1450
        %v1514 = vpack.c.bf16 %v1461, %v1458
        %v1515 = vpack.c.bf16 %v1469, %v1466
        %v1516 = vpack.c.bf16 %v1477, %v1474
        %v1517 = vpack.c.bf16 %v1485, %v1482
        %v1518 = vpack.c.bf16 %v1493, %v1490
        %v1519 = vpack.c.bf16 %v1501, %v1498
        %v1536 = vunpack.c.l.b16 %v1504
        %v1537 = vunpack.c.h.b16 %v1504
        %v1538 = vunpack.c.l.b16 %v1505
        %v1539 = vunpack.c.h.b16 %v1505
        %v1540 = vunpack.c.l.b16 %v1506
        %v1541 = vunpack.c.h.b16 %v1506
        %v1542 = vunpack.c.l.b16 %v1507
        %v1543 = vunpack.c.h.b16 %v1507
        %v1544 = vunpack.c.l.b16 %v1508
        %v1545 = vunpack.c.h.b16 %v1508
        %v1546 = vunpack.c.l.b16 %v1509
        %v1547 = vunpack.c.h.b16 %v1509
        %v1548 = vunpack.c.l.b16 %v1510
        %v1549 = vunpack.c.h.b16 %v1510
        %v1550 = vunpack.c.l.b16 %v1511
        %v1551 = vunpack.c.h.b16 %v1511
        %v1552 = vunpack.c.l.b16 %v1512
        %v1553 = vunpack.c.h.b16 %v1512
        %v1554 = vunpack.c.l.b16 %v1513
        %v1555 = vunpack.c.h.b16 %v1513
        %v1556 = vunpack.c.l.b16 %v1514
        %v1557 = vunpack.c.h.b16 %v1514
        %v1558 = vunpack.c.l.b16 %v1515
        %v1559 = vunpack.c.h.b16 %v1515
        %v1560 = vunpack.c.l.b16 %v1516
        %v1561 = vunpack.c.h.b16 %v1516
        %v1562 = vunpack.c.l.b16 %v1517
        %v1563 = vunpack.c.h.b16 %v1517
        %v1564 = vunpack.c.l.b16 %v1518
        %v1565 = vunpack.c.h.b16 %v1518
        %v1566 = vunpack.c.l.b16 %v1519
        %v1567 = vunpack.c.h.b16 %v1519
        %v1568 = vpack.c.b16 %v1536, %v1536
        %v1569 = vpack.c.b16 %v1537, %v1537
        %v1570 = vpack.c.b16 %v1538, %v1538
        %v1571 = vpack.c.b16 %v1539, %v1539
        %v1572 = vpack.c.b16 %v1540, %v1540
        %v1573 = vpack.c.b16 %v1541, %v1541
        %v1574 = vpack.c.b16 %v1542, %v1542
        %v1575 = vpack.c.b16 %v1543, %v1543
        %v1576 = vpack.c.b16 %v1544, %v1544
        %v1577 = vpack.c.b16 %v1545, %v1545
        %v1578 = vpack.c.b16 %v1546, %v1546
        %v1579 = vpack.c.b16 %v1547, %v1547
        %v1580 = vpack.c.b16 %v1548, %v1548
        %v1581 = vpack.c.b16 %v1549, %v1549
        %v1582 = vpack.c.b16 %v1550, %v1550
        %v1583 = vpack.c.b16 %v1551, %v1551
        %v1584 = vpack.c.b16 %v1552, %v1552
        %v1585 = vpack.c.b16 %v1553, %v1553
        %v1586 = vpack.c.b16 %v1554, %v1554
        %v1587 = vpack.c.b16 %v1555, %v1555
        %v1588 = vpack.c.b16 %v1556, %v1556
        %v1589 = vpack.c.b16 %v1557, %v1557
        %v1590 = vpack.c.b16 %v1558, %v1558
        %v1591 = vpack.c.b16 %v1559, %v1559
        %v1592 = vpack.c.b16 %v1560, %v1560
        %v1593 = vpack.c.b16 %v1561, %v1561
        %v1594 = vpack.c.b16 %v1562, %v1562
        %v1595 = vpack.c.b16 %v1563, %v1563
        %v1596 = vpack.c.b16 %v1564, %v1564
        %v1597 = vpack.c.b16 %v1565, %v1565
        %v1598 = vpack.c.b16 %v1566, %v1566
        %v1599 = vpack.c.b16 %v1567, %v1567
        %1632 = vst [vmem:[%s434] sm:$0xf] %v1568
        %1633 = vst [vmem:[%s434 + $0x4] sm:$0xf] %v1569
        %1634 = vst [vmem:[%s434 + $0x8] sm:$0xf] %v1570
        %1635 = vst [vmem:[%s434 + $0xc] sm:$0xf] %v1571
        %1636 = vst [vmem:[%s434 + $0x10] sm:$0xf] %v1572
        %1637 = vst [vmem:[%s434 + $0x14] sm:$0xf] %v1573
        %1638 = vst [vmem:[%s434 + $0x18] sm:$0xf] %v1574
        %1639 = vst [vmem:[%s434 + $0x1c] sm:$0xf] %v1575
        %1640 = vst [vmem:[%s434 + $0x20] sm:$0xf] %v1576
        %1641 = vst [vmem:[%s434 + $0x24] sm:$0xf] %v1577
        %1642 = vst [vmem:[%s434 + $0x28] sm:$0xf] %v1578
        %1643 = vst [vmem:[%s434 + $0x2c] sm:$0xf] %v1579
        %1644 = vst [vmem:[%s434 + $0x30] sm:$0xf] %v1580
        %1645 = vst [vmem:[%s434 + $0x34] sm:$0xf] %v1581
        %1646 = vst [vmem:[%s434 + $0x38] sm:$0xf] %v1582
        %1647 = vst [vmem:[%s434 + $0x3c] sm:$0xf] %v1583
        %1648 = vst [vmem:[%s434 + $0x40] sm:$0xf] %v1584
        %1649 = vst [vmem:[%s434 + $0x44] sm:$0xf] %v1585
        %1650 = vst [vmem:[%s434 + $0x48] sm:$0xf] %v1586
        %1651 = vst [vmem:[%s434 + $0x4c] sm:$0xf] %v1587
        %1652 = vst [vmem:[%s434 + $0x50] sm:$0xf] %v1588
        %1653 = vst [vmem:[%s434 + $0x54] sm:$0xf] %v1589
        %1654 = vst [vmem:[%s434 + $0x58] sm:$0xf] %v1590
        %1655 = vst [vmem:[%s434 + $0x5c] sm:$0xf] %v1591
        %1656 = vst [vmem:[%s434 + $0x60] sm:$0xf] %v1592
        %1657 = vst [vmem:[%s434 + $0x64] sm:$0xf] %v1593
        %1658 = vst [vmem:[%s434 + $0x68] sm:$0xf] %v1594
        %1659 = vst [vmem:[%s434 + $0x6c] sm:$0xf] %v1595
        %1660 = vst [vmem:[%s434 + $0x70] sm:$0xf] %v1596
        %1661 = vst [vmem:[%s434 + $0x74] sm:$0xf] %v1597
        %1662 = vst [vmem:[%s434 + $0x78] sm:$0xf] %v1598
        %1663 = vst [vmem:[%s434 + $0x7c] sm:$0xf] %v1599
        %s1664 = sand.u32 %s208, 1
        %s1665 = scalar_lea.sflag [#allocation4], %s1664
        %s1666 = sand.u32 %s208, 1
        %s1667 = smul.addr %s1666, 128
        %s1668 = scalar_lea.vmem [#allocation10], %s1667
        %s1669 = sand.u32 %s32, 1
        %s1670 = scalar_lea.sflag [#allocation12], %s1669
        %s1671 = sand.u32 %s236, 1
        %s1672 = smul.addr %s1671, 128
        %s1673 = scalar_lea.vmem [#allocation11], %s1672
        %s1674 = sand.u32 %s32, 1
        %s1675 = scalar_lea.sflag [#allocation12], %s1674
        %s1676 = sand.u32 %s264, 1
        %s1677 = smul.addr %s1676, 128
        %s1678 = scalar_lea.vmem [#allocation13], %s1677
        // Predicated region
        $region65: #{tpu_custom_call.1} parent=47 // pred_check
          %p1679 = pneg %p218
        $region66: #{tpu_custom_call.1} parent=47 // pred_check_branch
          %1681 = sbr.rel (%p1679) target = $region68
        $region67: #{tpu_custom_call.1} parent=47 // pred_region
          %s1682 = smul.u32 32, %s37
          %s1684 = ssub.s32 2048, 2048
          %1685 = vsyncadd %s1665, %s1684
          %s1686 = smul.addr %s36, 32
          %s1687 = sadd.s32 %s1682, %s1686
          %s1688 = smul.addr %s1687, 64
          %s1689 = scalar_lea.hbm %s7, %s1688
          %s1690 = sshll.u32 %s1668, 4
          %s1691 = int_to_ptr.vmem [resolvable:$true] %s1690
          %1696 = dma.vmem_to_hbm [thread:$0]  %s1691, 2048, %s1689, %s1665, 64, 64, 4
        $region68: #{tpu_custom_call.1} parent=47 // pred_fallthru
          _
        // Predicated region
        $region69: #{tpu_custom_call.1} parent=47 // pred_check
          %p1697 = pneg %p246
        $region70: #{tpu_custom_call.1} parent=47 // pred_check_branch
          %1699 = sbr.rel (%p1697) target = $region72
        $region71: #{tpu_custom_call.1} parent=47 // pred_region
          %s1700 = smul.u32 32, %s37
          %s1702 = ssub.s32 2048, 2048
          %1703 = vsyncadd %s1670, %s1702
          %s1704 = smul.addr %s36, 32
          %s1705 = sadd.s32 %s1700, %s1704
          %s1706 = smul.addr %s1705, 64
          %s1707 = scalar_lea.hbm %s8, %s1706
          %s1708 = sshll.u32 %s1673, 4
          %s1709 = int_to_ptr.vmem [resolvable:$true] %s1708
          %1714 = dma.vmem_to_hbm [thread:$0]  %s1709, 2048, %s1707, %s1670, 64, 64, 4
        $region72: #{tpu_custom_call.1} parent=47 // pred_fallthru
          _
        // Predicated region
        $region73: #{tpu_custom_call.1} parent=47 // pred_check
          %p1715 = pneg %p274
        $region74: #{tpu_custom_call.1} parent=47 // pred_check_branch
          %1717 = sbr.rel (%p1715) target = $region76
        $region75: #{tpu_custom_call.1} parent=47 // pred_region
          %s1718 = smul.u32 32, %s37
          %s1720 = ssub.s32 2048, 2048
          %1721 = vsyncadd %s1675, %s1720
          %s1722 = smul.addr %s36, 32
          %s1723 = sadd.s32 %s1718, %s1722
          %s1724 = smul.addr %s1723, 64
          %s1725 = scalar_lea.hbm %s9, %s1724
          %s1726 = sshll.u32 %s1678, 4
          %s1727 = int_to_ptr.vmem [resolvable:$true] %s1726
          %1732 = dma.vmem_to_hbm [thread:$0]  %s1727, 2048, %s1725, %s1675, 64, 64, 4
        $region76: #{tpu_custom_call.1} parent=47 // pred_fallthru
          _
      $region48: #{tpu_custom_call.1} parent=5 // pred_fallthru
        _
      %p1733 = scmp.le.s32.totalorder 2, %s27
      // Predicated region
      $region77: #{tpu_custom_call.1} parent=5 // pred_check
        %p1734 = pneg %p1733
      $region78: #{tpu_custom_call.1} parent=5 // pred_check_branch
        %1736 = sbr.rel (%p1734) target = $region80
      $region79: #{tpu_custom_call.1} parent=5 // pred_region
        %s1737 = ssub.s32 %s27, 2
        // Predicated region
        $region81: #{tpu_custom_call.1} parent=79 // pred_check
          %p1738 = pneg %p224
        $region82: #{tpu_custom_call.1} parent=79 // pred_check_branch
          %1740 = sbr.rel (%p1738) target = $region84
        $region83: #{tpu_custom_call.1} parent=79 // pred_region
          %s1741 = sand.u32 %s209, 1
          %s1742 = scalar_lea.sflag [#allocation4], %s1741
          %s1743 = sand.u32 %s209, 1
          %s1744 = smul.addr %s1743, 128
          %s1745 = scalar_lea.vmem [#allocation10], %s1744
          %1746 = dma.done %s1742, 2048
        $region84: #{tpu_custom_call.1} parent=79 // pred_fallthru
          _
        // Predicated region
        $region85: #{tpu_custom_call.1} parent=79 // pred_check
          %p1747 = pneg %p252
        $region86: #{tpu_custom_call.1} parent=79 // pred_check_branch
          %1749 = sbr.rel (%p1747) target = $region88
        $region87: #{tpu_custom_call.1} parent=79 // pred_region
          %s1750 = sand.u32 %s33, 1
          %s1751 = scalar_lea.sflag [#allocation12], %s1750
          %s1752 = sand.u32 %s237, 1
          %s1753 = smul.addr %s1752, 128
          %s1754 = scalar_lea.vmem [#allocation11], %s1753
          %1755 = dma.done %s1751, 2048
        $region88: #{tpu_custom_call.1} parent=79 // pred_fallthru
          _
        // Predicated region
        $region89: #{tpu_custom_call.1} parent=79 // pred_check
          %p1756 = pneg %p280
        $region90: #{tpu_custom_call.1} parent=79 // pred_check_branch
          %1758 = sbr.rel (%p1756) target = $region92
        $region91: #{tpu_custom_call.1} parent=79 // pred_region
          %s1759 = sand.u32 %s33, 1
          %s1760 = scalar_lea.sflag [#allocation12], %s1759
          %s1761 = sand.u32 %s265, 1
          %s1762 = smul.addr %s1761, 128
          %s1763 = scalar_lea.vmem [#allocation13], %s1762
          %1764 = dma.done %s1760, 2048
        $region92: #{tpu_custom_call.1} parent=79 // pred_fallthru
          _
      $region80: #{tpu_custom_call.1} parent=5 // pred_fallthru
        _
    $region6: #{tpu_custom_call.1} parent=1 // loop_footer
      %s31 = sadd.s32 1, %s27
    $region7: #{tpu_custom_call.1} parent=1 // loop_footer_branch
      %26 = sbr.rel target = $region3
    $region8: #{tpu_custom_call.1} parent=1 // loop_exit
      _
    %1765 = vsyncpa [#allocation3], 1
    %s1766 = scalar_lea.sflag [#allocation3], 1
    %1767 = vsyncpa %s1766, 1
    %1768 = vsyncpa [#allocation6], 1
    %1769 = vsyncpa [#allocation9], 1
    %1770 = vsyncpa [#allocation4], 1
    %s1771 = scalar_lea.sflag [#allocation4], 1
    %1772 = vsyncpa %s1771, 1
    %1773 = vsyncpa [#allocation12], 1
    %s1774 = scalar_lea.sflag [#allocation12], 1
    %1775 = vsyncpa %s1774, 1

</llo_original>
